<compile_context>
chip_gen: v6e
topology: v6e:2x2x1
jax: 0.10.0
libtpu: 0.0.40
codegen_flags: <defaults>
</compile_context>

<pallas_src>
import functools
import math

import jax
import jax.numpy as jnp
from jax import lax
from jax.experimental import pallas as pl
from jax.experimental.pallas import tpu as pltpu


# ----------------------------- fused Pallas kernel --------------------------

def _mha_head_kernel(q_ref, k_ref, v_ref,
                     wq_ref, bq_ref, wk_ref, bk_ref, wv_ref, bv_ref,
                     wfc_ref, bfc_ref,
                     out_ref, *rest,
                     scale, inv_heads, compute_weights):
    """One (batch, head) grid step.

    q_ref: (1, Lq, d_k)  k_ref: (1, Lk, d_k)  v_ref: (1, Lv, d_v)
    wq/wk: (1, d_k, d_k)  wv/wfc: (1, d_v, d_v)  biases: (1, 1, d)
    out_ref: (1, Lq, d_v) -- revisited across the head axis, written at the last head.
    optional attn_ref: (1, Lq, Lk) head-mean softmax weights, accumulated across heads.
    acc_ref: (Lq, d_v) fp32 VMEM accumulator for the fused fc projection.
    """
    if compute_weights:
        attn_ref, acc_ref = rest
    else:
        (acc_ref,) = rest

    h = pl.program_id(1)
    bf16 = jnp.bfloat16
    f32 = jnp.float32

    @pl.when(h == 0)
    def _():
        acc_ref[...] = jnp.zeros_like(acc_ref)

    if compute_weights:
        @pl.when(h == 0)
        def _():
            attn_ref[0] = jnp.zeros(attn_ref.shape[1:], attn_ref.dtype)

    # Per-head QKV projections. bf16 MXU operands, fp32 accumulation, fp32 bias add (VPU).
    q = q_ref[0].astype(bf16)                              # (Lq, d_k)
    k = k_ref[0].astype(bf16)                              # (Lk, d_k)
    v = v_ref[0].astype(bf16)                              # (Lv, d_v)
    qp = (jnp.dot(q, wq_ref[0].astype(bf16), preferred_element_type=f32)
          + bq_ref[0].astype(f32))                         # (Lq, d_k)
    kp = (jnp.dot(k, wk_ref[0].astype(bf16), preferred_element_type=f32)
          + bk_ref[0].astype(f32))                         # (Lk, d_k)
    vp = (jnp.dot(v, wv_ref[0].astype(bf16), preferred_element_type=f32)
          + bv_ref[0].astype(f32))                         # (Lk, d_v)

    # Scores: contract last dim of BOTH operands (no k^T materialized).
    # NOTE: d_k=32 contraction fills only 32/128 (v5e) or 32/256 (v6e/v7x) of the MXU
    # systolic depth -- architectural floor for this module's head width.
    s = lax.dot_general(qp.astype(bf16), kp.astype(bf16),
                        (((1,), (1,)), ((), ())),
                        preferred_element_type=f32) * scale        # (Lq, Lk)
    m = jnp.max(s, axis=-1, keepdims=True)
    p = jnp.exp(s - m)
    denom = jnp.sum(p, axis=-1, keepdims=True)
    inv = pl.reciprocal(denom, approx=True)                # EUP slot, ~free
    inv = inv * (2.0 - denom * inv)                        # one Newton step -> fp32-exact rows
    attn = p * inv                                         # (Lq, Lk)

    # Per-head context + fused output projection contribution.
    ctx = jnp.dot(attn.astype(bf16), vp.astype(bf16),
                  preferred_element_type=f32)              # (Lq, d_v)
    contrib = jnp.dot(ctx.astype(bf16), wfc_ref[0].astype(bf16),
                      preferred_element_type=f32)          # (Lq, d_v_out)
    acc_ref[...] += contrib

    if compute_weights:
        attn_ref[0] += (attn * inv_heads).astype(attn_ref.dtype)

    @pl.when(h == pl.num_programs(1) - 1)
    def _():
        out_ref[0] = (acc_ref[...] + bfc_ref[0].astype(f32)).astype(out_ref.dtype)


# ----------------------------- wrapper ---------------------------------------

def multi_head_attention(params, q, k, v, d_k, d_v, n_heads, need_weights=False):
    B, Lq, dq_in = q.shape
    _, Lk, dk_in = k.shape
    _, Lv, dv_in = v.shape
    assert Lk == Lv, "attention requires len_k == len_v"
    assert dq_in == d_k and dk_in == d_k and dv_in == d_v

    wq, bq = params["w_qs"]        # (d_k, H*d_k), (H*d_k,)
    wk, bk = params["w_ks"]
    wv, bv = params["w_vs"]
    wfc, bfc = params["fc"]        # (H*d_v, d_v), (d_v,)

    # Host-side per-head weight layout (H, d_in, d_out): the index_map delivers a full
    # head's columns, so the kernel never slices 32-lane sub-columns.
    wq3 = wq.reshape(d_k, n_heads, d_k).transpose(1, 0, 2)
    wk3 = wk.reshape(d_k, n_heads, d_k).transpose(1, 0, 2)
    wv3 = wv.reshape(d_v, n_heads, d_v).transpose(1, 0, 2)
    wfc3 = wfc.reshape(n_heads, d_v, d_v)                  # row-slices == per-head fc rows
    bq3 = bq.reshape(n_heads, 1, d_k)
    bk3 = bk.reshape(n_heads, 1, d_k)
    bv3 = bv.reshape(n_heads, 1, d_v)
    bfc3 = bfc.reshape(1, 1, d_v)

    scale = 1.0 / math.sqrt(d_k)
    kernel = functools.partial(_mha_head_kernel, scale=scale,
                               inv_heads=1.0 / n_heads,
                               compute_weights=need_weights)

    def per_batch(shape):
        return pl.BlockSpec(shape, lambda b, h: (b, 0, 0))

    def per_head(shape):
        return pl.BlockSpec(shape, lambda b, h: (h, 0, 0))

    in_specs = [
        per_batch((1, Lq, d_k)),
        per_batch((1, Lk, d_k)),
        per_batch((1, Lv, d_v)),
        per_head((1, d_k, d_k)), per_head((1, 1, d_k)),        # wq, bq
        per_head((1, d_k, d_k)), per_head((1, 1, d_k)),        # wk, bk
        per_head((1, d_v, d_v)), per_head((1, 1, d_v)),        # wv, bv
        per_head((1, d_v, d_v)),                               # wfc
        pl.BlockSpec((1, 1, d_v), lambda b, h: (0, 0, 0)),     # bfc (shared)
    ]

    out_block = per_batch((1, Lq, d_v))
    if need_weights:
        out_shape = (jax.ShapeDtypeStruct((B, Lq, d_v), q.dtype),
                     jax.ShapeDtypeStruct((B, Lq, Lk), jnp.float32))
        out_specs = (out_block, per_batch((1, Lq, Lk)))
    else:
        out_shape = jax.ShapeDtypeStruct((B, Lq, d_v), q.dtype)
        out_specs = out_block

    result = pl.pallas_call(
        kernel,
        out_shape=out_shape,
        grid=(B, n_heads),
        in_specs=in_specs,
        out_specs=out_specs,
        scratch_shapes=[pltpu.VMEM((Lq, d_v), jnp.float32)],
        compiler_params=pltpu.CompilerParams(
            # batch axis megacore-shards on v7x; head axis is the fc/attn reduction.
            dimension_semantics=("parallel", "arbitrary")),
    )(q, k, v, wq3, bq3, wk3, bk3, wv3, bv3, wfc3, bfc3)

    if need_weights:
        out, attn = result
        return out, attn
    # TODO(synk): PyTorch returns the raw per-head (H*B, Lq, Lk) weights even when
    # need_weights=False; we skip that O(H*B*L^2) fp32 writeback as pure waste.
    return result, None


# ----------------------------- params ---------------------------------------

def init_params(key, d_k, d_v, n_heads, dtype=jnp.float32):
    """Deterministic parameter init matching nn.Linear shapes (stored as (in, out))."""
    ks = jax.random.split(key, 8)

    def lin(kw, kb, fan_in, fan_out):
        bound = 1.0 / math.sqrt(fan_in)
        w = jax.random.uniform(kw, (fan_in, fan_out), dtype, -bound, bound)
        b = jax.random.uniform(kb, (fan_out,), dtype, -bound, bound)
        return w, b

    params = {}
    params["w_qs"] = lin(ks[0], ks[1], d_k, n_heads * d_k)
    params["w_ks"] = lin(ks[2], ks[3], d_k, n_heads * d_k)
    params["w_vs"] = lin(ks[4], ks[5], d_v, n_heads * d_v)
    params["fc"] = lin(ks[6], ks[7], n_heads * d_v, d_v)
    return params


# ----------------------------- reference (plain JAX, fp32) ------------------

def reference_forward(params, q, k, v, d_k, d_v, n_heads):
    B, Lq, _ = q.shape
    _, Lk, _ = k.shape
    qp = q.reshape(-1, d_k) @ params["w_qs"][0] + params["w_qs"][1]
    kp = k.reshape(-1, d_k) @ params["w_ks"][0] + params["w_ks"][1]
    vp = v.reshape(-1, d_v) @ params["w_vs"][0] + params["w_vs"][1]
    qh = qp.reshape(B, Lq, n_heads, d_k).transpose(2, 0, 1, 3).reshape(-1, Lq, d_k)
    kh = kp.reshape(B, Lk, n_heads, d_k).transpose(2, 0, 1, 3).reshape(-1, Lk, d_k)
    vh = vp.reshape(B, Lk, n_heads, d_v).transpose(2, 0, 1, 3).reshape(-1, Lk, d_v)
    s = jnp.einsum("bqd,bkd->bqk", qh, kh) / math.sqrt(d_k)
    w = jax.nn.softmax(s, axis=-1)
    out = jnp.einsum("bqk,bkd->bqd", w, vh)
    out = out.reshape(n_heads, B, Lq, d_v).transpose(1, 2, 0, 3).reshape(B, Lq, -1)
    out = out.reshape(B * Lq, -1) @ params["fc"][0] + params["fc"][1]
    attn_mean = w.reshape(n_heads, B, Lq, Lk).mean(axis=0)
    return out.reshape(B, Lq, d_v), attn_mean


# ----------------------------- main ------------------------------------------

if __name__ == "__main__":
    B, L = 2, 8
    d_k, d_v, n_heads = 32, 32, 4

    key = jax.random.PRNGKey(0)
    kq, kk, kv, kp = jax.random.split(key, 4)
    q = jax.random.normal(kq, (B, L, d_k), jnp.float32)
    k = jax.random.normal(kk, (B, L, d_k), jnp.float32)
    v = jax.random.normal(kv, (B, L, d_v), jnp.float32)

    params = init_params(kp, d_k, d_v, n_heads)

    # need_weights=True path: output + in-kernel head-mean attention weights.
    out, attn = multi_head_attention(params, q, k, v, d_k, d_v, n_heads,
                                     need_weights=True)
    out = jax.block_until_ready(out)
    attn = jax.block_until_ready(attn)

    ref_out, ref_attn = reference_forward(params, q, k, v, d_k, d_v, n_heads)
    assert out.shape == (B, L, d_v)
    assert attn.shape == (B, L, L)
    # Tolerance relaxed vs exact fp32 because MXU operands are bf16 (fp32 accumulation).
    assert jnp.allclose(out, ref_out, atol=2e-2, rtol=2e-2), "output mismatch vs reference"
    assert jnp.allclose(attn, ref_attn, atol=2e-2, rtol=2e-2), "attn mismatch vs reference"

    # need_weights=False path: no weights writeback at all.
    out2, attn2 = multi_head_attention(params, q, k, v, d_k, d_v, n_heads,
                                       need_weights=False)
    out2 = jax.block_until_ready(out2)
    assert attn2 is None
    assert jnp.allclose(out2, ref_out, atol=2e-2, rtol=2e-2), "output mismatch (no-weights path)"

    print("KERNEL_OK")
</pallas_src>

<mosaic_0001>
module attributes {stable_mosaic.version = 11 : i64} {
  func.func @_mha_head_kernel(%arg0: i32, %arg1: i32, %arg2: memref<1x8x32xf32, #tpu.memory_space<vmem>>, %arg3: memref<1x8x32xf32, #tpu.memory_space<vmem>>, %arg4: memref<1x8x32xf32, #tpu.memory_space<vmem>>, %arg5: memref<1x32x32xf32, #tpu.memory_space<vmem>>, %arg6: memref<1x1x32xf32, #tpu.memory_space<vmem>>, %arg7: memref<1x32x32xf32, #tpu.memory_space<vmem>>, %arg8: memref<1x1x32xf32, #tpu.memory_space<vmem>>, %arg9: memref<1x32x32xf32, #tpu.memory_space<vmem>>, %arg10: memref<1x1x32xf32, #tpu.memory_space<vmem>>, %arg11: memref<1x32x32xf32, #tpu.memory_space<vmem>>, %arg12: memref<1x1x32xf32, #tpu.memory_space<vmem>>, %arg13: memref<1x8x32xf32, #tpu.memory_space<vmem>>, %arg14: memref<1x8x8xf32, #tpu.memory_space<vmem>>, %arg15: memref<8x32xf32, #tpu.memory_space<vmem>>) attributes {dimension_semantics = [#tpu.dimension_semantics<parallel>, #tpu.dimension_semantics<arbitrary>], iteration_bounds = array<i64: 2, 4>, scalar_prefetch = 0 : i64, scratch_operands = 1 : i64, tpu.core_type = #tpu.core_type<tc>, window_params = [{transform_indices = @transform_0, window_bounds = array<i64: 1, 8, 32>}, {transform_indices = @transform_1, window_bounds = array<i64: 1, 8, 32>}, {transform_indices = @transform_2, window_bounds = array<i64: 1, 8, 32>}, {transform_indices = @transform_3, window_bounds = array<i64: 1, 32, 32>}, {transform_indices = @transform_4, window_bounds = array<i64: 1, 1, 32>}, {transform_indices = @transform_5, window_bounds = array<i64: 1, 32, 32>}, {transform_indices = @transform_6, window_bounds = array<i64: 1, 1, 32>}, {transform_indices = @transform_7, window_bounds = array<i64: 1, 32, 32>}, {transform_indices = @transform_8, window_bounds = array<i64: 1, 1, 32>}, {transform_indices = @transform_9, window_bounds = array<i64: 1, 32, 32>}, {pipeline_mode = #tpu.pipeline_mode<synchronous>, transform_indices = @transform_10, window_bounds = array<i64: 1, 1, 32>}, {transform_indices = @transform_11, window_bounds = array<i64: 1, 8, 32>}, {transform_indices = @transform_12, window_bounds = array<i64: 1, 8, 8>}]} {
    %c0_i32 = arith.constant 0 : i32
    %0 = arith.cmpi eq, %arg1, %c0_i32 : i32
    %1 = arith.extui %0 : i1 to i32
    %c0_i32_0 = arith.constant 0 : i32
    %2 = arith.cmpi ne, %1, %c0_i32_0 : i32
    scf.if %2 {
      %cst_53 = arith.constant 0.000000e+00 : f32
      %80 = vector.broadcast %cst_53 : f32 to vector<8x32xf32>
      %c0_54 = arith.constant 0 : index
      %c0_55 = arith.constant 0 : index
      %81 = vector.load %arg15[%c0_54, %c0_55] : memref<8x32xf32, #tpu.memory_space<vmem>>, vector<8x32xf32>
      tpu.vector_store %arg15[%c0_54, %c0_55], %80 {strides = array<i32>} : memref<8x32xf32, #tpu.memory_space<vmem>>, vector<8x32xf32>,
    } else {
    }
    %c0_i32_1 = arith.constant 0 : i32
    %3 = arith.cmpi eq, %arg1, %c0_i32_1 : i32
    %4 = arith.extui %3 : i1 to i32
    %c0_i32_2 = arith.constant 0 : i32
    %5 = arith.cmpi ne, %4, %c0_i32_2 : i32
    scf.if %5 {
      %cst_53 = arith.constant 0.000000e+00 : f32
      %80 = vector.broadcast %cst_53 : f32 to vector<8x8xf32>
      %c0_54 = arith.constant 0 : index
      %c0_55 = arith.constant 0 : index
      %c0_56 = arith.constant 0 : index
      %81 = vector.load %arg14[%c0_54, %c0_55, %c0_56] : memref<1x8x8xf32, #tpu.memory_space<vmem>>, vector<1x8x8xf32>
      %82 = vector.shape_cast %81 : vector<1x8x8xf32> to vector<8x8xf32>
      %83 = vector.shape_cast %80 : vector<8x8xf32> to vector<1x8x8xf32>
      tpu.vector_store %arg14[%c0_54, %c0_55, %c0_56], %83 {strides = array<i32>} : memref<1x8x8xf32, #tpu.memory_space<vmem>>, vector<1x8x8xf32>,
    } else {
    }
    %c0 = arith.constant 0 : index
    %c0_3 = arith.constant 0 : index
    %c0_4 = arith.constant 0 : index
    %6 = vector.load %arg2[%c0, %c0_3, %c0_4] : memref<1x8x32xf32, #tpu.memory_space<vmem>>, vector<1x8x32xf32>
    %7 = vector.shape_cast %6 : vector<1x8x32xf32> to vector<8x32xf32>
    %8 = arith.truncf %7 : vector<8x32xf32> to vector<8x32xbf16>
    %c0_5 = arith.constant 0 : index
    %c0_6 = arith.constant 0 : index
    %c0_7 = arith.constant 0 : index
    %9 = vector.load %arg3[%c0_5, %c0_6, %c0_7] : memref<1x8x32xf32, #tpu.memory_space<vmem>>, vector<1x8x32xf32>
    %10 = vector.shape_cast %9 : vector<1x8x32xf32> to vector<8x32xf32>
    %11 = arith.truncf %10 : vector<8x32xf32> to vector<8x32xbf16>
    %c0_8 = arith.constant 0 : index
    %c0_9 = arith.constant 0 : index
    %c0_10 = arith.constant 0 : index
    %12 = vector.load %arg4[%c0_8, %c0_9, %c0_10] : memref<1x8x32xf32, #tpu.memory_space<vmem>>, vector<1x8x32xf32>
    %13 = vector.shape_cast %12 : vector<1x8x32xf32> to vector<8x32xf32>
    %14 = arith.truncf %13 : vector<8x32xf32> to vector<8x32xbf16>
    %c0_11 = arith.constant 0 : index
    %c0_12 = arith.constant 0 : index
    %c0_13 = arith.constant 0 : index
    %15 = vector.load %arg5[%c0_11, %c0_12, %c0_13] : memref<1x32x32xf32, #tpu.memory_space<vmem>>, vector<1x32x32xf32>
    %16 = vector.shape_cast %15 : vector<1x32x32xf32> to vector<32x32xf32>
    %17 = arith.truncf %16 : vector<32x32xf32> to vector<32x32xbf16>
    %cst = arith.constant dense<0.000000e+00> : vector<8x32xf32>
    %18 = tpu.matmul %8, %17, %cst {dimension_numbers = #tpu.dot_dimension_numbers<[1], [0], [0], [1], [0, 0, 1, 1], [], []>} : vector<8x32xbf16>, vector<32x32xbf16>, vector<8x32xf32> -> vector<8x32xf32>
    %c0_14 = arith.constant 0 : index
    %c0_15 = arith.constant 0 : index
    %c0_16 = arith.constant 0 : index
    %19 = vector.load %arg6[%c0_14, %c0_15, %c0_16] : memref<1x1x32xf32, #tpu.memory_space<vmem>>, vector<1x1x32xf32>
    %20 = vector.shape_cast %19 : vector<1x1x32xf32> to vector<1x32xf32>
    %21 = vector.broadcast %20 : vector<1x32xf32> to vector<8x32xf32>
    %22 = arith.addf %18, %21 : vector<8x32xf32>
    %c0_17 = arith.constant 0 : index
    %c0_18 = arith.constant 0 : index
    %c0_19 = arith.constant 0 : index
    %23 = vector.load %arg7[%c0_17, %c0_18, %c0_19] : memref<1x32x32xf32, #tpu.memory_space<vmem>>, vector<1x32x32xf32>
    %24 = vector.shape_cast %23 : vector<1x32x32xf32> to vector<32x32xf32>
    %25 = arith.truncf %24 : vector<32x32xf32> to vector<32x32xbf16>
    %cst_20 = arith.constant dense<0.000000e+00> : vector<8x32xf32>
    %26 = tpu.matmul %11, %25, %cst_20 {dimension_numbers = #tpu.dot_dimension_numbers<[1], [0], [0], [1], [0, 0, 1, 1], [], []>} : vector<8x32xbf16>, vector<32x32xbf16>, vector<8x32xf32> -> vector<8x32xf32>
    %c0_21 = arith.constant 0 : index
    %c0_22 = arith.constant 0 : index
    %c0_23 = arith.constant 0 : index
    %27 = vector.load %arg8[%c0_21, %c0_22, %c0_23] : memref<1x1x32xf32, #tpu.memory_space<vmem>>, vector<1x1x32xf32>
    %28 = vector.shape_cast %27 : vector<1x1x32xf32> to vector<1x32xf32>
    %29 = vector.broadcast %28 : vector<1x32xf32> to vector<8x32xf32>
    %30 = arith.addf %26, %29 : vector<8x32xf32>
    %c0_24 = arith.constant 0 : index
    %c0_25 = arith.constant 0 : index
    %c0_26 = arith.constant 0 : index
    %31 = vector.load %arg9[%c0_24, %c0_25, %c0_26] : memref<1x32x32xf32, #tpu.memory_space<vmem>>, vector<1x32x32xf32>
    %32 = vector.shape_cast %31 : vector<1x32x32xf32> to vector<32x32xf32>
    %33 = arith.truncf %32 : vector<32x32xf32> to vector<32x32xbf16>
    %cst_27 = arith.constant dense<0.000000e+00> : vector<8x32xf32>
    %34 = tpu.matmul %14, %33, %cst_27 {dimension_numbers = #tpu.dot_dimension_numbers<[1], [0], [0], [1], [0, 0, 1, 1], [], []>} : vector<8x32xbf16>, vector<32x32xbf16>, vector<8x32xf32> -> vector<8x32xf32>
    %c0_28 = arith.constant 0 : index
    %c0_29 = arith.constant 0 : index
    %c0_30 = arith.constant 0 : index
    %35 = vector.load %arg10[%c0_28, %c0_29, %c0_30] : memref<1x1x32xf32, #tpu.memory_space<vmem>>, vector<1x1x32xf32>
    %36 = vector.shape_cast %35 : vector<1x1x32xf32> to vector<1x32xf32>
    %37 = vector.broadcast %36 : vector<1x32xf32> to vector<8x32xf32>
    %38 = arith.addf %34, %37 : vector<8x32xf32>
    %39 = arith.truncf %22 : vector<8x32xf32> to vector<8x32xbf16>
    %40 = arith.truncf %30 : vector<8x32xf32> to vector<8x32xbf16>
    %cst_31 = arith.constant dense<0.000000e+00> : vector<8x8xf32>
    %41 = tpu.matmul %39, %40, %cst_31 {dimension_numbers = #tpu.dot_dimension_numbers<[1], [1], [0], [0], [0, 0, 1, 0], [], []>} : vector<8x32xbf16>, vector<8x32xbf16>, vector<8x8xf32> -> vector<8x8xf32>
    %cst_32 = arith.constant 0.176776692 : f32
    %42 = vector.broadcast %cst_32 : f32 to vector<8x8xf32>
    %43 = arith.mulf %41, %42 : vector<8x8xf32>
    %cst_33 = arith.constant dense<0xFF800000> : vector<8xf32>
    %44 = vector.multi_reduction <maximumf>, %43, %cst_33 [1] : vector<8x8xf32> to vector<8xf32>
    %45 = vector.shape_cast %44 : vector<8xf32> to vector<8x1xf32>
    %46 = vector.broadcast %45 : vector<8x1xf32> to vector<8x8xf32>
    %47 = arith.subf %43, %46 : vector<8x8xf32>
    %48 = math.exp %47 : vector<8x8xf32>
    %cst_34 = arith.constant dense<0.000000e+00> : vector<8xf32>
    %49 = vector.multi_reduction <add>, %48, %cst_34 [1] : vector<8x8xf32> to vector<8xf32>
    %50 = vector.shape_cast %49 : vector<8xf32> to vector<8x1xf32>
    %51 = tpu.reciprocal %50 {approx = true} : vector<8x1xf32> -> vector<8x1xf32>
    %52 = arith.mulf %50, %51 : vector<8x1xf32>
    %cst_35 = arith.constant 2.000000e+00 : f32
    %53 = vector.broadcast %cst_35 : f32 to vector<8x1xf32>
    %54 = arith.subf %53, %52 : vector<8x1xf32>
    %55 = arith.mulf %51, %54 : vector<8x1xf32>
    %56 = vector.broadcast %55 : vector<8x1xf32> to vector<8x8xf32>
    %57 = arith.mulf %48, %56 : vector<8x8xf32>
    %58 = arith.truncf %57 : vector<8x8xf32> to vector<8x8xbf16>
    %59 = arith.truncf %38 : vector<8x32xf32> to vector<8x32xbf16>
    %cst_36 = arith.constant dense<0.000000e+00> : vector<8x32xf32>
    %60 = tpu.matmul %58, %59, %cst_36 {dimension_numbers = #tpu.dot_dimension_numbers<[1], [0], [0], [1], [0, 0, 1, 1], [], []>} : vector<8x8xbf16>, vector<8x32xbf16>, vector<8x32xf32> -> vector<8x32xf32>
    %61 = arith.truncf %60 : vector<8x32xf32> to vector<8x32xbf16>
    %c0_37 = arith.constant 0 : index
    %c0_38 = arith.constant 0 : index
    %c0_39 = arith.constant 0 : index
    %62 = vector.load %arg11[%c0_37, %c0_38, %c0_39] : memref<1x32x32xf32, #tpu.memory_space<vmem>>, vector<1x32x32xf32>
    %63 = vector.shape_cast %62 : vector<1x32x32xf32> to vector<32x32xf32>
    %64 = arith.truncf %63 : vector<32x32xf32> to vector<32x32xbf16>
    %cst_40 = arith.constant dense<0.000000e+00> : vector<8x32xf32>
    %65 = tpu.matmul %61, %64, %cst_40 {dimension_numbers = #tpu.dot_dimension_numbers<[1], [0], [0], [1], [0, 0, 1, 1], [], []>} : vector<8x32xbf16>, vector<32x32xbf16>, vector<8x32xf32> -> vector<8x32xf32>
    %c0_41 = arith.constant 0 : index
    %c0_42 = arith.constant 0 : index
    %66 = vector.load %arg15[%c0_41, %c0_42] : memref<8x32xf32, #tpu.memory_space<vmem>>, vector<8x32xf32>
    %67 = arith.addf %66, %65 : vector<8x32xf32>
    %c0_43 = arith.constant 0 : index
    %c0_44 = arith.constant 0 : index
    %68 = vector.load %arg15[%c0_43, %c0_44] : memref<8x32xf32, #tpu.memory_space<vmem>>, vector<8x32xf32>
    tpu.vector_store %arg15[%c0_43, %c0_44], %67 {strides = array<i32>} : memref<8x32xf32, #tpu.memory_space<vmem>>, vector<8x32xf32>,
    %c0_45 = arith.constant 0 : index
    %c0_46 = arith.constant 0 : index
    %c0_47 = arith.constant 0 : index
    %69 = vector.load %arg14[%c0_45, %c0_46, %c0_47] : memref<1x8x8xf32, #tpu.memory_space<vmem>>, vector<1x8x8xf32>
    %70 = vector.shape_cast %69 : vector<1x8x8xf32> to vector<8x8xf32>
    %cst_48 = arith.constant 2.500000e-01 : f32
    %71 = vector.broadcast %cst_48 : f32 to vector<8x8xf32>
    %72 = arith.mulf %57, %71 : vector<8x8xf32>
    %73 = arith.addf %70, %72 : vector<8x8xf32>
    %c0_49 = arith.constant 0 : index
    %c0_50 = arith.constant 0 : index
    %c0_51 = arith.constant 0 : index
    %74 = vector.load %arg14[%c0_49, %c0_50, %c0_51] : memref<1x8x8xf32, #tpu.memory_space<vmem>>, vector<1x8x8xf32>
    %75 = vector.shape_cast %74 : vector<1x8x8xf32> to vector<8x8xf32>
    %76 = vector.shape_cast %73 : vector<8x8xf32> to vector<1x8x8xf32>
    tpu.vector_store %arg14[%c0_49, %c0_50, %c0_51], %76 {strides = array<i32>} : memref<1x8x8xf32, #tpu.memory_space<vmem>>, vector<1x8x8xf32>,
    %c3_i32 = arith.constant 3 : i32
    %77 = arith.cmpi eq, %arg1, %c3_i32 : i32
    %78 = arith.extui %77 : i1 to i32
    %c0_i32_52 = arith.constant 0 : i32
    %79 = arith.cmpi ne, %78, %c0_i32_52 : i32
    scf.if %79 {
      %c0_53 = arith.constant 0 : index
      %c0_54 = arith.constant 0 : index
      %80 = vector.load %arg15[%c0_53, %c0_54] : memref<8x32xf32, #tpu.memory_space<vmem>>, vector<8x32xf32>
      %c0_55 = arith.constant 0 : index
      %c0_56 = arith.constant 0 : index
      %c0_57 = arith.constant 0 : index
      %81 = vector.load %arg12[%c0_55, %c0_56, %c0_57] : memref<1x1x32xf32, #tpu.memory_space<vmem>>, vector<1x1x32xf32>
      %82 = vector.shape_cast %81 : vector<1x1x32xf32> to vector<1x32xf32>
      %83 = vector.broadcast %82 : vector<1x32xf32> to vector<8x32xf32>
      %84 = arith.addf %80, %83 : vector<8x32xf32>
      %c0_58 = arith.constant 0 : index
      %c0_59 = arith.constant 0 : index
      %c0_60 = arith.constant 0 : index
      %85 = vector.load %arg13[%c0_58, %c0_59, %c0_60] : memref<1x8x32xf32, #tpu.memory_space<vmem>>, vector<1x8x32xf32>
      %86 = vector.shape_cast %85 : vector<1x8x32xf32> to vector<8x32xf32>
      %87 = vector.shape_cast %84 : vector<8x32xf32> to vector<1x8x32xf32>
      tpu.vector_store %arg13[%c0_58, %c0_59, %c0_60], %87 {strides = array<i32>} : memref<1x8x32xf32, #tpu.memory_space<vmem>>, vector<1x8x32xf32>,
    } else {
    }
    return
  }
  func.func @transform_0(%arg0: i32, %arg1: i32) -> (i32, i32, i32) {
    %c0_i32 = arith.constant 0 : i32
    %c0_i32_0 = arith.constant 0 : i32
    %c0_i32_1 = arith.constant 0 : i32
    return %arg0, %c0_i32, %c0_i32_0 : i32, i32, i32
  }
  func.func @transform_1(%arg0: i32, %arg1: i32) -> (i32, i32, i32) {
    %c0_i32 = arith.constant 0 : i32
    %c0_i32_0 = arith.constant 0 : i32
    %c0_i32_1 = arith.constant 0 : i32
    return %arg0, %c0_i32, %c0_i32_0 : i32, i32, i32
  }
  func.func @transform_2(%arg0: i32, %arg1: i32) -> (i32, i32, i32) {
    %c0_i32 = arith.constant 0 : i32
    %c0_i32_0 = arith.constant 0 : i32
    %c0_i32_1 = arith.constant 0 : i32
    return %arg0, %c0_i32, %c0_i32_0 : i32, i32, i32
  }
  func.func @transform_3(%arg0: i32, %arg1: i32) -> (i32, i32, i32) {
    %c0_i32 = arith.constant 0 : i32
    %c0_i32_0 = arith.constant 0 : i32
    %c0_i32_1 = arith.constant 0 : i32
    return %arg1, %c0_i32, %c0_i32_0 : i32, i32, i32
  }
  func.func @transform_4(%arg0: i32, %arg1: i32) -> (i32, i32, i32) {
    %c0_i32 = arith.constant 0 : i32
    %c0_i32_0 = arith.constant 0 : i32
    %c0_i32_1 = arith.constant 0 : i32
    return %arg1, %c0_i32, %c0_i32_0 : i32, i32, i32
  }
  func.func @transform_5(%arg0: i32, %arg1: i32) -> (i32, i32, i32) {
    %c0_i32 = arith.constant 0 : i32
    %c0_i32_0 = arith.constant 0 : i32
    %c0_i32_1 = arith.constant 0 : i32
    return %arg1, %c0_i32, %c0_i32_0 : i32, i32, i32
  }
  func.func @transform_6(%arg0: i32, %arg1: i32) -> (i32, i32, i32) {
    %c0_i32 = arith.constant 0 : i32
    %c0_i32_0 = arith.constant 0 : i32
    %c0_i32_1 = arith.constant 0 : i32
    return %arg1, %c0_i32, %c0_i32_0 : i32, i32, i32
  }
  func.func @transform_7(%arg0: i32, %arg1: i32) -> (i32, i32, i32) {
    %c0_i32 = arith.constant 0 : i32
    %c0_i32_0 = arith.constant 0 : i32
    %c0_i32_1 = arith.constant 0 : i32
    return %arg1, %c0_i32, %c0_i32_0 : i32, i32, i32
  }
  func.func @transform_8(%arg0: i32, %arg1: i32) -> (i32, i32, i32) {
    %c0_i32 = arith.constant 0 : i32
    %c0_i32_0 = arith.constant 0 : i32
    %c0_i32_1 = arith.constant 0 : i32
    return %arg1, %c0_i32, %c0_i32_0 : i32, i32, i32
  }
  func.func @transform_9(%arg0: i32, %arg1: i32) -> (i32, i32, i32) {
    %c0_i32 = arith.constant 0 : i32
    %c0_i32_0 = arith.constant 0 : i32
    %c0_i32_1 = arith.constant 0 : i32
    return %arg1, %c0_i32, %c0_i32_0 : i32, i32, i32
  }
  func.func @transform_10(%arg0: i32, %arg1: i32) -> (i32, i32, i32) {
    %c0_i32 = arith.constant 0 : i32
    %c0_i32_0 = arith.constant 0 : i32
    %c0_i32_1 = arith.constant 0 : i32
    %c0_i32_2 = arith.constant 0 : i32
    return %c0_i32, %c0_i32_0, %c0_i32_1 : i32, i32, i32
  }
  func.func @transform_11(%arg0: i32, %arg1: i32) -> (i32, i32, i32) {
    %c0_i32 = arith.constant 0 : i32
    %c0_i32_0 = arith.constant 0 : i32
    %c0_i32_1 = arith.constant 0 : i32
    return %arg0, %c0_i32, %c0_i32_0 : i32, i32, i32
  }
  func.func @transform_12(%arg0: i32, %arg1: i32) -> (i32, i32, i32) {
    %c0_i32 = arith.constant 0 : i32
    %c0_i32_0 = arith.constant 0 : i32
    %c0_i32_1 = arith.constant 0 : i32
    return %arg0, %c0_i32, %c0_i32_0 : i32, i32, i32
  }
}

</mosaic_0001>

<llo_original>
// kernel: tpu_custom_call.1
$region0: #{tpu_custom_call.1}
  #allocation0 [shape = 'u32[]', space=smem, size = 0x4, offset = 0x4, fixed_abs, tag = 'smem constant byte address 0x4 - core index']
  #allocation1 [shape = 'u32[144,128]{1,0:T(1,128)}', space=vmem, size = 0x12000, scoped, tag = 'internal scratch']
  #allocation2 [shape = 'f32[8,32]{1,0:T(8,128)}', space=vmem, size = 0x1000, scoped, tag = 'scratch operand']
  %s0 = inlined_call_operand.hbm [shape: f32[2,8,32], index: 0, kind: input, shape index: {}]
  %s1 = inlined_call_operand.hbm [shape: f32[2,8,32], index: 1, kind: input, shape index: {}]
  %s2 = inlined_call_operand.hbm [shape: f32[2,8,32], index: 2, kind: input, shape index: {}]
  %s3 = inlined_call_operand.hbm [shape: f32[4,32,32], index: 3, kind: input, shape index: {}]
  %s4 = inlined_call_operand.vmem [shape: f32[4,1,32], index: 4, kind: input, shape index: {}]
  %s5 = inlined_call_operand.hbm [shape: f32[4,32,32], index: 5, kind: input, shape index: {}]
  %s6 = inlined_call_operand.vmem [shape: f32[4,1,32], index: 6, kind: input, shape index: {}]
  %s7 = inlined_call_operand.hbm [shape: f32[4,32,32], index: 7, kind: input, shape index: {}]
  %s8 = inlined_call_operand.vmem [shape: f32[4,1,32], index: 8, kind: input, shape index: {}]
  %s9 = inlined_call_operand.hbm [shape: f32[4,32,32], index: 9, kind: input, shape index: {}]
  %s10 = inlined_call_operand.vmem [shape: f32[1,1,32], index: 10, kind: input, shape index: {}]
  %s11 = inlined_call_operand.hbm [shape: f32[2,8,32], index: 11, kind: output, shape index: {0}]
  %s12 = inlined_call_operand.hbm [shape: f32[2,8,8], index: 12, kind: output, shape index: {1}]
  %13 = xla_tuple %s11, %s12
  %s14 = sld [smem:[#allocation0]]
  $region121: #{tpu_custom_call.1} parent=0
    _
  %s16 = ssub.s32 1, %s14
  %s17 = scalar_select 0, %s16, %s14
  $region1: #{tpu_custom_call.1} parent=0
    #allocation3 [shape = 'u8[8192]{0}', space=vmem, size = 0x2000, scoped, tag = 'input window, operand 0']
    #allocation4 [shape = 's32[2]{0}', space=sflag, size = 0x8, scoped, tag = 'scoped memory for tpu_custom_call.1']
    #allocation5 [shape = 's32[2]{0}', space=sflag, size = 0x8, scoped, tag = 'scoped memory for tpu_custom_call.1']
    #allocation6 [shape = 'u8[8192]{0}', space=vmem, size = 0x2000, scoped, tag = 'input window, operand 1']
    #allocation7 [shape = 's32[2]{0}', space=sflag, size = 0x8, scoped, tag = 'scoped memory for tpu_custom_call.1']
    #allocation8 [shape = 'u8[8192]{0}', space=vmem, size = 0x2000, scoped, tag = 'input window, operand 2']
    #allocation9 [shape = 'u8[32768]{0}', space=vmem, size = 0x8000, scoped, tag = 'input window, operand 3']
    #allocation10 [shape = 's32[2]{0}', space=sflag, size = 0x8, scoped, tag = 'scoped memory for tpu_custom_call.1']
    #allocation11 [shape = 'u8[32768]{0}', space=vmem, size = 0x8000, scoped, tag = 'input window, operand 5']
    #allocation12 [shape = 'u8[32768]{0}', space=vmem, size = 0x8000, scoped, tag = 'input window, operand 7']
    #allocation13 [shape = 's32[2]{0}', space=sflag, size = 0x8, scoped, tag = 'scoped memory for tpu_custom_call.1']
    #allocation14 [shape = 'u8[32768]{0}', space=vmem, size = 0x8000, scoped, tag = 'input window, operand 9']
    #allocation15 [shape = 'u8[8192]{0}', space=vmem, size = 0x2000, scoped, tag = 'output window, operand 0']
    #allocation16 [shape = 'u8[8192]{0}', space=vmem, size = 0x2000, scoped, tag = 'output window, operand 1']
    #allocation17 [shape = 's32[2]{0}', space=sflag, size = 0x8, scoped, tag = 'scoped memory for tpu_custom_call.1']
    %18 = vsyncpa [#allocation4], 0
    %s19 = scalar_lea.sflag [#allocation4], 1
    %20 = vsyncpa %s19, 0
    %21 = vsyncpa [#allocation7], 0
    %s22 = scalar_lea.sflag [#allocation7], 1
    %23 = vsyncpa %s22, 0
    %24 = vsyncpa [#allocation10], 0
    %s25 = scalar_lea.sflag [#allocation10], 1
    %26 = vsyncpa %s25, 0
    %27 = vsyncpa [#allocation13], 0
    %s28 = scalar_lea.sflag [#allocation13], 1
    %29 = vsyncpa %s28, 0
    %30 = vsyncpa [#allocation5], 0
    %s31 = scalar_lea.sflag [#allocation5], 1
    %32 = vsyncpa %s31, 0
    %33 = vsyncpa [#allocation17], 0
    %s34 = scalar_lea.sflag [#allocation17], 1
    %35 = vsyncpa %s34, 0
    loop: start=0, step=1, limit=10
    $region2: #{tpu_custom_call.1} parent=1 // loop_pre_header
      _
    $region3: #{tpu_custom_call.1} parent=1 // loop_header
      %s37 = sphi 0, %s41
      %p38 = scmp.ge.s32.totalorder %s37, 10
      %s44 = sphi 0, %s56
      %s45 = sphi 0, %s52
      %s46 = sphi 0, %s44
      %s47 = sphi 0, %s45
      %s48 = sphi 0, %s46
      %s49 = sphi 0, %s47
      %s59 = sphi 0, %s61
      %s62 = sphi 0, %s59
      %s63 = sphi 0, %s62
      %s79 = sphi 0, %s63
      %s85 = sphi 0, %s87
      %s88 = sphi 0, %s85
      %s89 = sphi 0, %s88
      %s105 = sphi 0, %s89
      %s111 = sphi 0, %s113
      %s114 = sphi 0, %s111
      %s115 = sphi 0, %s114
      %s131 = sphi 0, %s115
      %s137 = sphi 0, %s139
      %s140 = sphi 0, %s137
      %s141 = sphi 0, %s140
      %s157 = sphi 0, %s141
      %s163 = sphi 0, %s165
      %s166 = sphi 0, %s163
      %s167 = sphi 0, %s166
      %s183 = sphi 0, %s167
      %s189 = sphi 0, %s191
      %s192 = sphi 0, %s189
      %s193 = sphi 0, %s192
      %s209 = sphi 0, %s193
      %s215 = sphi 0, %s217
      %s218 = sphi 0, %s215
      %s219 = sphi 0, %s218
      %s235 = sphi 0, %s219
      %s241 = sphi 0, %s243
      %s244 = sphi 0, %s241
      %s245 = sphi 0, %s244
      %s261 = sphi 0, %s245
      %s267 = sphi 0, %s269
      %s270 = sphi 0, %s267
      %s271 = sphi 0, %s270
      %s287 = sphi 0, %s271
      %s293 = sphi 0, %s295
      %s296 = sphi 0, %s293
      %s297 = sphi 0, %s296
      %s313 = sphi 0, %s297
      %s317 = sphi 0, %s317
      %s319 = sphi 0, %s317
      %s320 = sphi 0, %s319
      %s334 = sphi 0, %s320
      %s340 = sphi 0, %s342
      %s343 = sphi 0, %s340
      %s344 = sphi 0, %s343
      %s360 = sphi 0, %s344
      %s366 = sphi 0, %s368
      %s369 = sphi 0, %s366
      %s370 = sphi 0, %s369
      %s386 = sphi 0, %s370
    $region4: #{tpu_custom_call.1} parent=1 // loop_header_branch
      %40 = sbr.rel (%p38) target = $region8
    $region5: #{tpu_custom_call.1} parent=1 // loop_body
      %s42 = ssub.s32 %s37, 1
      %s43 = ssub.s32 %s37, 2
      %s50 = sadd.s32 1, %s45
      %p51 = scmp.ge.s32.totalorder %s50, 4
      %s52 = scalar_select %p51, 0, %s50
      %s53 = sadd.s32 1, %s44
      %s54 = scalar_select %p51, %s53, %s44
      %p55 = scmp.ge.s32.totalorder %s54, 2
      %s56 = scalar_select %p55, 0, %s54
      %s57 = ssub.s32 %s44, %s56
      %p58 = scmp.eq.s32.totalorder %s57, 0
      %s60 = sadd.s32 %s59, 1
      %s61 = scalar_select %p58, %s59, %s60
      %p64 = pneg %p58
      %p65 = scmp.eq.s32.totalorder %s37, 7
      %p66 = por %p64, %p65
      %p67 = scmp.ne.s32.totalorder %s59, %s62
      %p68 = scmp.eq.s32.totalorder %s37, 0
      %p69 = por %p67, %p68
      %p70 = scmp.ne.s32.totalorder %s59, %s62
      %p71 = scmp.eq.s32.totalorder %s42, 7
      %p72 = por %p70, %p71
      %p73 = scmp.ne.s32.totalorder %s62, %s63
      %p74 = scmp.eq.s32.totalorder %s42, 0
      %p75 = por %p73, %p74
      %p76 = scmp.ne.s32.totalorder %s62, %s63
      %p77 = scmp.eq.s32.totalorder %s43, 7
      %p78 = por %p76, %p77
      %p80 = scmp.ne.s32.totalorder %s63, %s79
      %p81 = scmp.eq.s32.totalorder %s43, 0
      %p82 = por %p80, %p81
      %s83 = ssub.s32 %s44, %s56
      %p84 = scmp.eq.s32.totalorder %s83, 0
      %s86 = sadd.s32 %s85, 1
      %s87 = scalar_select %p84, %s85, %s86
      %p90 = pneg %p84
      %p91 = scmp.eq.s32.totalorder %s37, 7
      %p92 = por %p90, %p91
      %p93 = scmp.ne.s32.totalorder %s85, %s88
      %p94 = scmp.eq.s32.totalorder %s37, 0
      %p95 = por %p93, %p94
      %p96 = scmp.ne.s32.totalorder %s85, %s88
      %p97 = scmp.eq.s32.totalorder %s42, 7
      %p98 = por %p96, %p97
      %p99 = scmp.ne.s32.totalorder %s88, %s89
      %p100 = scmp.eq.s32.totalorder %s42, 0
      %p101 = por %p99, %p100
      %p102 = scmp.ne.s32.totalorder %s88, %s89
      %p103 = scmp.eq.s32.totalorder %s43, 7
      %p104 = por %p102, %p103
      %p106 = scmp.ne.s32.totalorder %s89, %s105
      %p107 = scmp.eq.s32.totalorder %s43, 0
      %p108 = por %p106, %p107
      %s109 = ssub.s32 %s44, %s56
      %p110 = scmp.eq.s32.totalorder %s109, 0
      %s112 = sadd.s32 %s111, 1
      %s113 = scalar_select %p110, %s111, %s112
      %p116 = pneg %p110
      %p117 = scmp.eq.s32.totalorder %s37, 7
      %p118 = por %p116, %p117
      %p119 = scmp.ne.s32.totalorder %s111, %s114
      %p120 = scmp.eq.s32.totalorder %s37, 0
      %p121 = por %p119, %p120
      %p122 = scmp.ne.s32.totalorder %s111, %s114
      %p123 = scmp.eq.s32.totalorder %s42, 7
      %p124 = por %p122, %p123
      %p125 = scmp.ne.s32.totalorder %s114, %s115
      %p126 = scmp.eq.s32.totalorder %s42, 0
      %p127 = por %p125, %p126
      %p128 = scmp.ne.s32.totalorder %s114, %s115
      %p129 = scmp.eq.s32.totalorder %s43, 7
      %p130 = por %p128, %p129
      %p132 = scmp.ne.s32.totalorder %s115, %s131
      %p133 = scmp.eq.s32.totalorder %s43, 0
      %p134 = por %p132, %p133
      %s135 = ssub.s32 %s45, %s52
      %p136 = scmp.eq.s32.totalorder %s135, 0
      %s138 = sadd.s32 %s137, 1
      %s139 = scalar_select %p136, %s137, %s138
      %p142 = pneg %p136
      %p143 = scmp.eq.s32.totalorder %s37, 7
      %p144 = por %p142, %p143
      %p145 = scmp.ne.s32.totalorder %s137, %s140
      %p146 = scmp.eq.s32.totalorder %s37, 0
      %p147 = por %p145, %p146
      %p148 = scmp.ne.s32.totalorder %s137, %s140
      %p149 = scmp.eq.s32.totalorder %s42, 7
      %p150 = por %p148, %p149
      %p151 = scmp.ne.s32.totalorder %s140, %s141
      %p152 = scmp.eq.s32.totalorder %s42, 0
      %p153 = por %p151, %p152
      %p154 = scmp.ne.s32.totalorder %s140, %s141
      %p155 = scmp.eq.s32.totalorder %s43, 7
      %p156 = por %p154, %p155
      %p158 = scmp.ne.s32.totalorder %s141, %s157
      %p159 = scmp.eq.s32.totalorder %s43, 0
      %p160 = por %p158, %p159
      %s161 = ssub.s32 %s45, %s52
      %p162 = scmp.eq.s32.totalorder %s161, 0
      %s164 = sadd.s32 %s163, 1
      %s165 = scalar_select %p162, %s163, %s164
      %p168 = pneg %p162
      %p169 = scmp.eq.s32.totalorder %s37, 7
      %p170 = por %p168, %p169
      %p171 = scmp.ne.s32.totalorder %s163, %s166
      %p172 = scmp.eq.s32.totalorder %s37, 0
      %p173 = por %p171, %p172
      %p174 = scmp.ne.s32.totalorder %s163, %s166
      %p175 = scmp.eq.s32.totalorder %s42, 7
      %p176 = por %p174, %p175
      %p177 = scmp.ne.s32.totalorder %s166, %s167
      %p178 = scmp.eq.s32.totalorder %s42, 0
      %p179 = por %p177, %p178
      %p180 = scmp.ne.s32.totalorder %s166, %s167
      %p181 = scmp.eq.s32.totalorder %s43, 7
      %p182 = por %p180, %p181
      %p184 = scmp.ne.s32.totalorder %s167, %s183
      %p185 = scmp.eq.s32.totalorder %s43, 0
      %p186 = por %p184, %p185
      %s187 = ssub.s32 %s45, %s52
      %p188 = scmp.eq.s32.totalorder %s187, 0
      %s190 = sadd.s32 %s189, 1
      %s191 = scalar_select %p188, %s189, %s190
      %p194 = pneg %p188
      %p195 = scmp.eq.s32.totalorder %s37, 7
      %p196 = por %p194, %p195
      %p197 = scmp.ne.s32.totalorder %s189, %s192
      %p198 = scmp.eq.s32.totalorder %s37, 0
      %p199 = por %p197, %p198
      %p200 = scmp.ne.s32.totalorder %s189, %s192
      %p201 = scmp.eq.s32.totalorder %s42, 7
      %p202 = por %p200, %p201
      %p203 = scmp.ne.s32.totalorder %s192, %s193
      %p204 = scmp.eq.s32.totalorder %s42, 0
      %p205 = por %p203, %p204
      %p206 = scmp.ne.s32.totalorder %s192, %s193
      %p207 = scmp.eq.s32.totalorder %s43, 7
      %p208 = por %p206, %p207
      %p210 = scmp.ne.s32.totalorder %s193, %s209
      %p211 = scmp.eq.s32.totalorder %s43, 0
      %p212 = por %p210, %p211
      %s213 = ssub.s32 %s45, %s52
      %p214 = scmp.eq.s32.totalorder %s213, 0
      %s216 = sadd.s32 %s215, 1
      %s217 = scalar_select %p214, %s215, %s216
      %p220 = pneg %p214
      %p221 = scmp.eq.s32.totalorder %s37, 7
      %p222 = por %p220, %p221
      %p223 = scmp.ne.s32.totalorder %s215, %s218
      %p224 = scmp.eq.s32.totalorder %s37, 0
      %p225 = por %p223, %p224
      %p226 = scmp.ne.s32.totalorder %s215, %s218
      %p227 = scmp.eq.s32.totalorder %s42, 7
      %p228 = por %p226, %p227
      %p229 = scmp.ne.s32.totalorder %s218, %s219
      %p230 = scmp.eq.s32.totalorder %s42, 0
      %p231 = por %p229, %p230
      %p232 = scmp.ne.s32.totalorder %s218, %s219
      %p233 = scmp.eq.s32.totalorder %s43, 7
      %p234 = por %p232, %p233
      %p236 = scmp.ne.s32.totalorder %s219, %s235
      %p237 = scmp.eq.s32.totalorder %s43, 0
      %p238 = por %p236, %p237
      %s239 = ssub.s32 %s45, %s52
      %p240 = scmp.eq.s32.totalorder %s239, 0
      %s242 = sadd.s32 %s241, 1
      %s243 = scalar_select %p240, %s241, %s242
      %p246 = pneg %p240
      %p247 = scmp.eq.s32.totalorder %s37, 7
      %p248 = por %p246, %p247
      %p249 = scmp.ne.s32.totalorder %s241, %s244
      %p250 = scmp.eq.s32.totalorder %s37, 0
      %p251 = por %p249, %p250
      %p252 = scmp.ne.s32.totalorder %s241, %s244
      %p253 = scmp.eq.s32.totalorder %s42, 7
      %p254 = por %p252, %p253
      %p255 = scmp.ne.s32.totalorder %s244, %s245
      %p256 = scmp.eq.s32.totalorder %s42, 0
      %p257 = por %p255, %p256
      %p258 = scmp.ne.s32.totalorder %s244, %s245
      %p259 = scmp.eq.s32.totalorder %s43, 7
      %p260 = por %p258, %p259
      %p262 = scmp.ne.s32.totalorder %s245, %s261
      %p263 = scmp.eq.s32.totalorder %s43, 0
      %p264 = por %p262, %p263
      %s265 = ssub.s32 %s45, %s52
      %p266 = scmp.eq.s32.totalorder %s265, 0
      %s268 = sadd.s32 %s267, 1
      %s269 = scalar_select %p266, %s267, %s268
      %p272 = pneg %p266
      %p273 = scmp.eq.s32.totalorder %s37, 7
      %p274 = por %p272, %p273
      %p275 = scmp.ne.s32.totalorder %s267, %s270
      %p276 = scmp.eq.s32.totalorder %s37, 0
      %p277 = por %p275, %p276
      %p278 = scmp.ne.s32.totalorder %s267, %s270
      %p279 = scmp.eq.s32.totalorder %s42, 7
      %p280 = por %p278, %p279
      %p281 = scmp.ne.s32.totalorder %s270, %s271
      %p282 = scmp.eq.s32.totalorder %s42, 0
      %p283 = por %p281, %p282
      %p284 = scmp.ne.s32.totalorder %s270, %s271
      %p285 = scmp.eq.s32.totalorder %s43, 7
      %p286 = por %p284, %p285
      %p288 = scmp.ne.s32.totalorder %s271, %s287
      %p289 = scmp.eq.s32.totalorder %s43, 0
      %p290 = por %p288, %p289
      %s291 = ssub.s32 %s45, %s52
      %p292 = scmp.eq.s32.totalorder %s291, 0
      %s294 = sadd.s32 %s293, 1
      %s295 = scalar_select %p292, %s293, %s294
      %p298 = pneg %p292
      %p299 = scmp.eq.s32.totalorder %s37, 7
      %p300 = por %p298, %p299
      %p301 = scmp.ne.s32.totalorder %s293, %s296
      %p302 = scmp.eq.s32.totalorder %s37, 0
      %p303 = por %p301, %p302
      %p304 = scmp.ne.s32.totalorder %s293, %s296
      %p305 = scmp.eq.s32.totalorder %s42, 7
      %p306 = por %p304, %p305
      %p307 = scmp.ne.s32.totalorder %s296, %s297
      %p308 = scmp.eq.s32.totalorder %s42, 0
      %p309 = por %p307, %p308
      %p310 = scmp.ne.s32.totalorder %s296, %s297
      %p311 = scmp.eq.s32.totalorder %s43, 7
      %p312 = por %p310, %p311
      %p314 = scmp.ne.s32.totalorder %s297, %s313
      %p315 = scmp.eq.s32.totalorder %s43, 0
      %p316 = por %p314, %p315
      %s318 = sadd.s32 %s317, 1
      %p321 = scmp.eq.s32.totalorder %s37, 7
      %p322 = scmp.ne.s32.totalorder %s317, %s319
      %p323 = scmp.eq.s32.totalorder %s37, 0
      %p324 = por %p322, %p323
      %p325 = scmp.ne.s32.totalorder %s317, %s319
      %p326 = scmp.eq.s32.totalorder %s42, 7
      %p327 = por %p325, %p326
      %p328 = scmp.ne.s32.totalorder %s319, %s320
      %p329 = scmp.eq.s32.totalorder %s42, 0
      %p330 = por %p328, %p329
      %p331 = scmp.ne.s32.totalorder %s319, %s320
      %p332 = scmp.eq.s32.totalorder %s43, 7
      %p333 = por %p331, %p332
      %p335 = scmp.ne.s32.totalorder %s320, %s334
      %p336 = scmp.eq.s32.totalorder %s43, 0
      %p337 = por %p335, %p336
      %s338 = ssub.s32 %s44, %s56
      %p339 = scmp.eq.s32.totalorder %s338, 0
      %s341 = sadd.s32 %s340, 1
      %s342 = scalar_select %p339, %s340, %s341
      %p345 = pneg %p339
      %p346 = scmp.eq.s32.totalorder %s37, 7
      %p347 = por %p345, %p346
      %p348 = scmp.ne.s32.totalorder %s340, %s343
      %p349 = scmp.eq.s32.totalorder %s37, 0
      %p350 = por %p348, %p349
      %p351 = scmp.ne.s32.totalorder %s340, %s343
      %p352 = scmp.eq.s32.totalorder %s42, 7
      %p353 = por %p351, %p352
      %p354 = scmp.ne.s32.totalorder %s343, %s344
      %p355 = scmp.eq.s32.totalorder %s42, 0
      %p356 = por %p354, %p355
      %p357 = scmp.ne.s32.totalorder %s343, %s344
      %p358 = scmp.eq.s32.totalorder %s43, 7
      %p359 = por %p357, %p358
      %p361 = scmp.ne.s32.totalorder %s344, %s360
      %p362 = scmp.eq.s32.totalorder %s43, 0
      %p363 = por %p361, %p362
      %s364 = ssub.s32 %s44, %s56
      %p365 = scmp.eq.s32.totalorder %s364, 0
      %s367 = sadd.s32 %s366, 1
      %s368 = scalar_select %p365, %s366, %s367
      %p371 = pneg %p365
      %p372 = scmp.eq.s32.totalorder %s37, 7
      %p373 = por %p371, %p372
      %p374 = scmp.ne.s32.totalorder %s366, %s369
      %p375 = scmp.eq.s32.totalorder %s37, 0
      %p376 = por %p374, %p375
      %p377 = scmp.ne.s32.totalorder %s366, %s369
      %p378 = scmp.eq.s32.totalorder %s42, 7
      %p379 = por %p377, %p378
      %p380 = scmp.ne.s32.totalorder %s369, %s370
      %p381 = scmp.eq.s32.totalorder %s42, 0
      %p382 = por %p380, %p381
      %p383 = scmp.ne.s32.totalorder %s369, %s370
      %p384 = scmp.eq.s32.totalorder %s43, 7
      %p385 = por %p383, %p384
      %p387 = scmp.ne.s32.totalorder %s370, %s386
      %p388 = scmp.eq.s32.totalorder %s43, 0
      %p389 = por %p387, %p388
      %p390 = scmp.le.s32.totalorder 1, %s37
      %p391 = scmp.lt.s32.totalorder %s37, 9
      %p392 = pnand %p390, %p391
      %p393 = pneg %p392
      // Predicated region
      $region9: #{tpu_custom_call.1} parent=5 // pred_check
        _
      $region10: #{tpu_custom_call.1} parent=5 // pred_check_branch
        %395 = sbr.rel (%p392) target = $region12
      $region11: #{tpu_custom_call.1} parent=5 // pred_region
        %s396 = ssub.s32 %s37, 1
        // Predicated region
        $region13: #{tpu_custom_call.1} parent=11 // pred_check
          %p397 = pneg %p330
        $region14: #{tpu_custom_call.1} parent=11 // pred_check_branch
          %399 = sbr.rel (%p397) target = $region16
        $region15: #{tpu_custom_call.1} parent=11 // pred_region
          _
        $region16: #{tpu_custom_call.1} parent=11 // pred_fallthru
          _
      $region12: #{tpu_custom_call.1} parent=5 // pred_fallthru
        _
      %p400 = scmp.lt.s32.totalorder %s37, 8
      // Predicated region
      $region17: #{tpu_custom_call.1} parent=5 // pred_check
        %p401 = pneg %p400
      $region18: #{tpu_custom_call.1} parent=5 // pred_check_branch
        %403 = sbr.rel (%p401) target = $region20
      $region19: #{tpu_custom_call.1} parent=5 // pred_region
        // Predicated region
        $region21: #{tpu_custom_call.1} parent=19 // pred_check
          %p404 = pneg %p69
        $region22: #{tpu_custom_call.1} parent=19 // pred_check_branch
          %406 = sbr.rel (%p404) target = $region24
        $region23: #{tpu_custom_call.1} parent=19 // pred_region
          %s407 = sand.u32 %s59, 1
          %s408 = scalar_lea.sflag [#allocation4], %s407
          %s409 = sand.u32 %s59, 1
          %s410 = smul.addr %s409, 8
          %s411 = scalar_lea.vmem [#allocation3], %s410
          %s413 = ssub.s32 128, 128
          %414 = vsyncadd %s408, %s413
          %s415 = smul.addr %s44, 128
          %s416 = scalar_lea.hbm %s0, %s415
          %s418 = sshll.u32 %s411, 4
          %s419 = int_to_ptr.vmem [resolvable:$true] %s418
          %421 = dma.hbm_to_vmem [thread:$0]  %s416, 128, %s419, %s408
        $region24: #{tpu_custom_call.1} parent=19 // pred_fallthru
          _
        // Predicated region
        $region25: #{tpu_custom_call.1} parent=19 // pred_check
          %p422 = pneg %p95
        $region26: #{tpu_custom_call.1} parent=19 // pred_check_branch
          %424 = sbr.rel (%p422) target = $region28
        $region27: #{tpu_custom_call.1} parent=19 // pred_region
          %s425 = sand.u32 %s37, 1
          %s426 = scalar_lea.sflag [#allocation7], %s425
          %s427 = sand.u32 %s85, 1
          %s428 = smul.addr %s427, 8
          %s429 = scalar_lea.vmem [#allocation6], %s428
          %s431 = ssub.s32 128, 128
          %432 = vsyncadd %s426, %s431
          %s433 = smul.addr %s44, 128
          %s434 = scalar_lea.hbm %s1, %s433
          %s436 = sshll.u32 %s429, 4
          %s437 = int_to_ptr.vmem [resolvable:$true] %s436
          %439 = dma.hbm_to_vmem [thread:$0]  %s434, 128, %s437, %s426
        $region28: #{tpu_custom_call.1} parent=19 // pred_fallthru
          _
        // Predicated region
        $region29: #{tpu_custom_call.1} parent=19 // pred_check
          %p440 = pneg %p121
        $region30: #{tpu_custom_call.1} parent=19 // pred_check_branch
          %442 = sbr.rel (%p440) target = $region32
        $region31: #{tpu_custom_call.1} parent=19 // pred_region
          %s443 = sand.u32 %s37, 1
          %s444 = scalar_lea.sflag [#allocation7], %s443
          %s445 = sand.u32 %s111, 1
          %s446 = smul.addr %s445, 8
          %s447 = scalar_lea.vmem [#allocation8], %s446
          %s449 = ssub.s32 128, 128
          %450 = vsyncadd %s444, %s449
          %s451 = smul.addr %s44, 128
          %s452 = scalar_lea.hbm %s2, %s451
          %s454 = sshll.u32 %s447, 4
          %s455 = int_to_ptr.vmem [resolvable:$true] %s454
          %457 = dma.hbm_to_vmem [thread:$0]  %s452, 128, %s455, %s444
        $region32: #{tpu_custom_call.1} parent=19 // pred_fallthru
          _
        // Predicated region
        $region33: #{tpu_custom_call.1} parent=19 // pred_check
          %p458 = pneg %p147
        $region34: #{tpu_custom_call.1} parent=19 // pred_check_branch
          %460 = sbr.rel (%p458) target = $region36
        $region35: #{tpu_custom_call.1} parent=19 // pred_region
          %s461 = sand.u32 %s37, 1
          %s462 = scalar_lea.sflag [#allocation10], %s461
          %s463 = sand.u32 %s137, 1
          %s464 = smul.addr %s463, 32
          %s465 = scalar_lea.vmem [#allocation9], %s464
          %s467 = ssub.s32 512, 512
          %468 = vsyncadd %s462, %s467
          %s469 = smul.addr %s45, 4
          %s470 = smul.addr %s469, 128
          %s471 = scalar_lea.hbm %s3, %s470
          %s472 = sshll.u32 %s465, 4
          %s473 = int_to_ptr.vmem [resolvable:$true] %s472
          %478 = dma.hbm_to_vmem [thread:$0]  %s471, 512, %s473, %s462, 128, 128, 8
        $region36: #{tpu_custom_call.1} parent=19 // pred_fallthru
          _
        // Predicated region
        $region37: #{tpu_custom_call.1} parent=19 // pred_check
          %p479 = pneg %p173
        $region38: #{tpu_custom_call.1} parent=19 // pred_check_branch
          %481 = sbr.rel (%p479) target = $region40
        $region39: #{tpu_custom_call.1} parent=19 // pred_region
          %p482 = scmp.lt.s32.totalorder %s45, 3
          %s483 = scalar_select %p482, %s45, 3
          %s484 = scalar_lea.vmem %s4, %s483
        $region40: #{tpu_custom_call.1} parent=19 // pred_fallthru
          _
        // Predicated region
        $region41: #{tpu_custom_call.1} parent=19 // pred_check
          %p485 = pneg %p199
        $region42: #{tpu_custom_call.1} parent=19 // pred_check_branch
          %487 = sbr.rel (%p485) target = $region44
        $region43: #{tpu_custom_call.1} parent=19 // pred_region
          %s488 = sand.u32 %s37, 1
          %s489 = scalar_lea.sflag [#allocation10], %s488
          %s490 = sand.u32 %s189, 1
          %s491 = smul.addr %s490, 32
          %s492 = scalar_lea.vmem [#allocation11], %s491
          %s494 = ssub.s32 512, 512
          %495 = vsyncadd %s489, %s494
          %s496 = smul.addr %s45, 4
          %s497 = smul.addr %s496, 128
          %s498 = scalar_lea.hbm %s5, %s497
          %s499 = sshll.u32 %s492, 4
          %s500 = int_to_ptr.vmem [resolvable:$true] %s499
          %505 = dma.hbm_to_vmem [thread:$0]  %s498, 512, %s500, %s489, 128, 128, 8
        $region44: #{tpu_custom_call.1} parent=19 // pred_fallthru
          _
        // Predicated region
        $region45: #{tpu_custom_call.1} parent=19 // pred_check
          %p506 = pneg %p225
        $region46: #{tpu_custom_call.1} parent=19 // pred_check_branch
          %508 = sbr.rel (%p506) target = $region48
        $region47: #{tpu_custom_call.1} parent=19 // pred_region
          %p509 = scmp.lt.s32.totalorder %s45, 3
          %s510 = scalar_select %p509, %s45, 3
          %s511 = scalar_lea.vmem %s6, %s510
        $region48: #{tpu_custom_call.1} parent=19 // pred_fallthru
          _
        // Predicated region
        $region49: #{tpu_custom_call.1} parent=19 // pred_check
          %p512 = pneg %p251
        $region50: #{tpu_custom_call.1} parent=19 // pred_check_branch
          %514 = sbr.rel (%p512) target = $region52
        $region51: #{tpu_custom_call.1} parent=19 // pred_region
          %s515 = sand.u32 %s37, 1
          %s516 = scalar_lea.sflag [#allocation13], %s515
          %s517 = sand.u32 %s241, 1
          %s518 = smul.addr %s517, 32
          %s519 = scalar_lea.vmem [#allocation12], %s518
          %s521 = ssub.s32 512, 512
          %522 = vsyncadd %s516, %s521
          %s523 = smul.addr %s45, 4
          %s524 = smul.addr %s523, 128
          %s525 = scalar_lea.hbm %s7, %s524
          %s526 = sshll.u32 %s519, 4
          %s527 = int_to_ptr.vmem [resolvable:$true] %s526
          %532 = dma.hbm_to_vmem [thread:$0]  %s525, 512, %s527, %s516, 128, 128, 8
        $region52: #{tpu_custom_call.1} parent=19 // pred_fallthru
          _
        // Predicated region
        $region53: #{tpu_custom_call.1} parent=19 // pred_check
          %p533 = pneg %p277
        $region54: #{tpu_custom_call.1} parent=19 // pred_check_branch
          %535 = sbr.rel (%p533) target = $region56
        $region55: #{tpu_custom_call.1} parent=19 // pred_region
          %p536 = scmp.lt.s32.totalorder %s45, 3
          %s537 = scalar_select %p536, %s45, 3
          %s538 = scalar_lea.vmem %s8, %s537
        $region56: #{tpu_custom_call.1} parent=19 // pred_fallthru
          _
        // Predicated region
        $region57: #{tpu_custom_call.1} parent=19 // pred_check
          %p539 = pneg %p303
        $region58: #{tpu_custom_call.1} parent=19 // pred_check_branch
          %541 = sbr.rel (%p539) target = $region60
        $region59: #{tpu_custom_call.1} parent=19 // pred_region
          %s542 = sand.u32 %s37, 1
          %s543 = scalar_lea.sflag [#allocation13], %s542
          %s544 = sand.u32 %s293, 1
          %s545 = smul.addr %s544, 32
          %s546 = scalar_lea.vmem [#allocation14], %s545
          %s548 = ssub.s32 512, 512
          %549 = vsyncadd %s543, %s548
          %s550 = smul.addr %s45, 4
          %s551 = smul.addr %s550, 128
          %s552 = scalar_lea.hbm %s9, %s551
          %s553 = sshll.u32 %s546, 4
          %s554 = int_to_ptr.vmem [resolvable:$true] %s553
          %559 = dma.hbm_to_vmem [thread:$0]  %s552, 512, %s554, %s543, 128, 128, 8
        $region60: #{tpu_custom_call.1} parent=19 // pred_fallthru
          _
      $region20: #{tpu_custom_call.1} parent=5 // pred_fallthru
        _
      %p560 = scmp.le.s32.totalorder 1, %s37
      %p561 = scmp.lt.s32.totalorder %s37, 9
      %p562 = pnand %p560, %p561
      %p563 = pneg %p562
      // Predicated region
      $region61: #{tpu_custom_call.1} parent=5 // pred_check
        _
      $region62: #{tpu_custom_call.1} parent=5 // pred_check_branch
        %565 = sbr.rel (%p562) target = $region64
      $region63: #{tpu_custom_call.1} parent=5 // pred_region
        %s566 = ssub.s32 %s37, 1
        %s567 = sand.u32 %s62, 1
        %s568 = scalar_lea.sflag [#allocation4], %s567
        %s569 = sand.u32 %s62, 1
        %s570 = smul.addr %s569, 8
        %s571 = scalar_lea.vmem [#allocation3], %s570
        // Predicated region
        $region65: #{tpu_custom_call.1} parent=63 // pred_check
          %p572 = pneg %p75
        $region66: #{tpu_custom_call.1} parent=63 // pred_check_branch
          %574 = sbr.rel (%p572) target = $region68
        $region67: #{tpu_custom_call.1} parent=63 // pred_region
          %575 = dma.done %s568, 128
        $region68: #{tpu_custom_call.1} parent=63 // pred_fallthru
          _
        %s576 = sand.u32 %s42, 1
        %s577 = scalar_lea.sflag [#allocation7], %s576
        %s578 = sand.u32 %s88, 1
        %s579 = smul.addr %s578, 8
        %s580 = scalar_lea.vmem [#allocation6], %s579
        // Predicated region
        $region69: #{tpu_custom_call.1} parent=63 // pred_check
          %p581 = pneg %p101
        $region70: #{tpu_custom_call.1} parent=63 // pred_check_branch
          %583 = sbr.rel (%p581) target = $region72
        $region71: #{tpu_custom_call.1} parent=63 // pred_region
          %584 = dma.done %s577, 128
        $region72: #{tpu_custom_call.1} parent=63 // pred_fallthru
          _
        %s585 = sand.u32 %s42, 1
        %s586 = scalar_lea.sflag [#allocation7], %s585
        %s587 = sand.u32 %s114, 1
        %s588 = smul.addr %s587, 8
        %s589 = scalar_lea.vmem [#allocation8], %s588
        // Predicated region
        $region73: #{tpu_custom_call.1} parent=63 // pred_check
          %p590 = pneg %p127
        $region74: #{tpu_custom_call.1} parent=63 // pred_check_branch
          %592 = sbr.rel (%p590) target = $region76
        $region75: #{tpu_custom_call.1} parent=63 // pred_region
          %593 = dma.done %s586, 128
        $region76: #{tpu_custom_call.1} parent=63 // pred_fallthru
          _
        %s594 = sand.u32 %s42, 1
        %s595 = scalar_lea.sflag [#allocation10], %s594
        %s596 = sand.u32 %s140, 1
        %s597 = smul.addr %s596, 32
        %s598 = scalar_lea.vmem [#allocation9], %s597
        // Predicated region
        $region77: #{tpu_custom_call.1} parent=63 // pred_check
          %p599 = pneg %p153
        $region78: #{tpu_custom_call.1} parent=63 // pred_check_branch
          %601 = sbr.rel (%p599) target = $region80
        $region79: #{tpu_custom_call.1} parent=63 // pred_region
          %602 = dma.done %s595, 512
        $region80: #{tpu_custom_call.1} parent=63 // pred_fallthru
          _
        %s603 = sand.u32 %s42, 1
        %s604 = scalar_lea.sflag [#allocation10], %s603
        %s605 = sand.u32 %s192, 1
        %s606 = smul.addr %s605, 32
        %s607 = scalar_lea.vmem [#allocation11], %s606
        // Predicated region
        $region81: #{tpu_custom_call.1} parent=63 // pred_check
          %p608 = pneg %p205
        $region82: #{tpu_custom_call.1} parent=63 // pred_check_branch
          %610 = sbr.rel (%p608) target = $region84
        $region83: #{tpu_custom_call.1} parent=63 // pred_region
          %611 = dma.done %s604, 512
        $region84: #{tpu_custom_call.1} parent=63 // pred_fallthru
          _
        %s612 = sand.u32 %s42, 1
        %s613 = scalar_lea.sflag [#allocation13], %s612
        %s614 = sand.u32 %s244, 1
        %s615 = smul.addr %s614, 32
        %s616 = scalar_lea.vmem [#allocation12], %s615
        // Predicated region
        $region85: #{tpu_custom_call.1} parent=63 // pred_check
          %p617 = pneg %p257
        $region86: #{tpu_custom_call.1} parent=63 // pred_check_branch
          %619 = sbr.rel (%p617) target = $region88
        $region87: #{tpu_custom_call.1} parent=63 // pred_region
          %620 = dma.done %s613, 512
        $region88: #{tpu_custom_call.1} parent=63 // pred_fallthru
          _
        %s621 = sand.u32 %s42, 1
        %s622 = scalar_lea.sflag [#allocation13], %s621
        %s623 = sand.u32 %s296, 1
        %s624 = smul.addr %s623, 32
        %s625 = scalar_lea.vmem [#allocation14], %s624
        // Predicated region
        $region89: #{tpu_custom_call.1} parent=63 // pred_check
          %p626 = pneg %p309
        $region90: #{tpu_custom_call.1} parent=63 // pred_check_branch
          %628 = sbr.rel (%p626) target = $region92
        $region91: #{tpu_custom_call.1} parent=63 // pred_region
          %629 = dma.done %s622, 512
        $region92: #{tpu_custom_call.1} parent=63 // pred_fallthru
          _
        %s630 = sand.u32 %s62, 1
        %s631 = scalar_lea.sflag [#allocation4], %s630
        %s632 = sand.u32 %s62, 1
        %s633 = smul.addr %s632, 8
        %s634 = scalar_lea.vmem [#allocation3], %s633
        %p635 = pneg %p75
        %p636 = pneg %p72
        %s637 = sand.u32 %s42, 1
        %s638 = scalar_lea.sflag [#allocation7], %s637
        %s639 = sand.u32 %s88, 1
        %s640 = smul.addr %s639, 8
        %s641 = scalar_lea.vmem [#allocation6], %s640
        %p642 = pneg %p101
        %p643 = pneg %p98
        %s644 = sand.u32 %s42, 1
        %s645 = scalar_lea.sflag [#allocation7], %s644
        %s646 = sand.u32 %s114, 1
        %s647 = smul.addr %s646, 8
        %s648 = scalar_lea.vmem [#allocation8], %s647
        %p649 = pneg %p127
        %p650 = pneg %p124
        %s651 = sand.u32 %s42, 1
        %s652 = scalar_lea.sflag [#allocation10], %s651
        %s653 = sand.u32 %s140, 1
        %s654 = smul.addr %s653, 32
        %s655 = scalar_lea.vmem [#allocation9], %s654
        %p656 = pneg %p153
        %p657 = pneg %p150
        %p658 = scmp.lt.s32.totalorder %s47, 3
        %s659 = scalar_select %p658, %s47, 3
        %s660 = scalar_lea.vmem %s4, %s659
        %p661 = pneg %p179
        %p662 = pneg %p176
        %s663 = sand.u32 %s42, 1
        %s664 = scalar_lea.sflag [#allocation10], %s663
        %s665 = sand.u32 %s192, 1
        %s666 = smul.addr %s665, 32
        %s667 = scalar_lea.vmem [#allocation11], %s666
        %p668 = pneg %p205
        %p669 = pneg %p202
        %p670 = scmp.lt.s32.totalorder %s47, 3
        %s671 = scalar_select %p670, %s47, 3
        %s672 = scalar_lea.vmem %s6, %s671
        %p673 = pneg %p231
        %p674 = pneg %p228
        %s675 = sand.u32 %s42, 1
        %s676 = scalar_lea.sflag [#allocation13], %s675
        %s677 = sand.u32 %s244, 1
        %s678 = smul.addr %s677, 32
        %s679 = scalar_lea.vmem [#allocation12], %s678
        %p680 = pneg %p257
        %p681 = pneg %p254
        %p682 = scmp.lt.s32.totalorder %s47, 3
        %s683 = scalar_select %p682, %s47, 3
        %s684 = scalar_lea.vmem %s8, %s683
        %p685 = pneg %p283
        %p686 = pneg %p280
        %s687 = sand.u32 %s42, 1
        %s688 = scalar_lea.sflag [#allocation13], %s687
        %s689 = sand.u32 %s296, 1
        %s690 = smul.addr %s689, 32
        %s691 = scalar_lea.vmem [#allocation14], %s690
        %p692 = pneg %p309
        %p693 = pneg %p306
        %p694 = pneg %p330
        %p695 = pneg %p327
        %p696 = pneg %p356
        %p697 = pneg %p353
        %s698 = sand.u32 %s343, 1
        %s699 = scalar_lea.sflag [#allocation5], %s698
        %s700 = sand.u32 %s343, 1
        %s701 = smul.addr %s700, 8
        %s702 = scalar_lea.vmem [#allocation15], %s701
        %p703 = pneg %p382
        %p704 = pneg %p379
        %s705 = sand.u32 %s369, 1
        %s706 = scalar_lea.sflag [#allocation17], %s705
        %s707 = sand.u32 %s369, 1
        %s708 = smul.addr %s707, 8
        %s709 = scalar_lea.vmem [#allocation16], %s708
        %p710 = scmp.lt.s32.totalorder %s47, 3
        %s711 = scalar_select %p710, %s47, 3
        %s712 = scalar_lea.vmem %s4, %s711
        %p713 = scmp.lt.s32.totalorder %s47, 3
        %s714 = scalar_select %p713, %s47, 3
        %s715 = scalar_lea.vmem %s6, %s714
        %p716 = scmp.lt.s32.totalorder %s47, 3
        %s717 = scalar_select %p716, %s47, 3
        %s718 = scalar_lea.vmem %s8, %s717
        %p720 = scmp.eq.s32.totalorder %s47, 0
        // Predicated region
        $region93: #{tpu_custom_call.1} parent=63 // pred_check
          %p721 = pneg %p720
        $region94: #{tpu_custom_call.1} parent=63 // pred_check_branch
          %723 = sbr.rel (%p721) target = $region96
        $region95: #{tpu_custom_call.1} parent=63 // pred_region
          %vm724 = vcmask 261120
          %725 = vst.msk [vmem:[#allocation2] sm:$0xff] %vm724, 0.0
          %vm726 = vcmask 64512
          %727 = vst.msk [vmem:[%s709] sm:$0xff] %vm726, 0.0
        $region96: #{tpu_custom_call.1} parent=63 // pred_fallthru
          _
        %v728 = vld [vmem:[%s571] sm:$0xff]
        %v729 = vpack.c.bf16 %v728, %v728
        %v730 = vld [vmem:[%s580] sm:$0xff]
        %v731 = vpack.c.bf16 %v730, %v730
        %v732 = vld [vmem:[%s589] sm:$0xff]
        %v733 = vpack.c.bf16 %v732, %v732
        %v734 = vld [vmem:[%s598] sm:$0xff]
        %v735 = vld [vmem:[%s598 + $0x8] sm:$0xff]
        %v736 = vld [vmem:[%s598 + $0x10] sm:$0xff]
        %v737 = vld [vmem:[%s598 + $0x18] sm:$0xff]
        %v738 = vpack.c.bf16 %v735, %v734
        %v739 = vpack.c.bf16 %v737, %v736
        %v740 = vld [vmem:[%s712] sm:$0x1]
        %v742 = vlaneseq
        %v743 = vshrl.u32 %v742, 7
        %v744 = vsub.s32 0, %v743
        %v745 = vrot.slane %v740, %v744
        %vm747 = vcmask 261120
        %v749 = vsel %vm747, %v729, 0
        %751 = vmatprep.subr.bf16.mxu0 0
        %752 = vmatpush1.bf16.msra.mxu0 0
        %753 = vmatprep.subr.bf16.mxu0 0
        %754 = vmatpush1.bf16.msra.mxu0 0
        %755 = vmatprep.subr.bf16.mxu0 0
        %756 = vmatpush1.bf16.msra.mxu0 0
        %757 = vmatprep.subr.bf16.mxu0 0
        %758 = vmatpush1.bf16.msra.mxu0 0
        %759 = vmatprep.subr.bf16.mxu0 0
        %760 = vmatpush1.bf16.msra.mxu0 0
        %761 = vmatprep.subr.bf16.mxu0 0
        %762 = vmatpush1.bf16.msra.mxu0 0
        %763 = vmatprep.subr.bf16.mxu0 0
        %764 = vmatpush1.bf16.msra.mxu0 %v739
        %765 = vmatprep.subr.bf16.mxu0 0
        %766 = vmatpush1.bf16.msra.mxu0 %v738
        %767 = vmatprep.subr.bf16.mxu0 0
        %768 = vmatpush2.bf16.msra.mxu0 0
        %769 = vmatprep.subr.bf16.mxu0 0
        %770 = vmatpush2.bf16.msra.mxu0 0
        %771 = vmatprep.subr.bf16.mxu0 0
        %772 = vmatpush2.bf16.msra.mxu0 0
        %773 = vmatprep.subr.bf16.mxu0 0
        %774 = vmatpush2.bf16.msra.mxu0 0
        %775 = vmatprep.subr.bf16.mxu0 0
        %776 = vmatpush2.bf16.msra.mxu0 0
        %777 = vmatprep.subr.bf16.mxu0 0
        %778 = vmatpush2.bf16.msra.mxu0 0
        %779 = vmatprep.subr.bf16.mxu0 0
        %780 = vmatpush2.bf16.msra.mxu0 0
        %781 = vmatprep.subr.bf16.mxu0 0
        %782 = vmatpush2.bf16.msra.mxu0 0
        %783 = vmatprep.mubr.bf16.mxu0 0
        %784 = vmatmul.mubr.bf16.gmra.mxu0 %v749
        %v785 = vpop.f32.mrf.mxu0
        %v786 = vadd.f32 %v745, %v785
        %v787 = vpop.f32.mrf.mxu0
        %v788 = vpop.f32.mrf.mxu0
        %v789 = vpop.f32.mrf.mxu0
        %790 = vdwg.mxu0
        %v791 = vld [vmem:[%s607] sm:$0xff]
        %v792 = vld [vmem:[%s607 + $0x8] sm:$0xff]
        %v793 = vld [vmem:[%s607 + $0x10] sm:$0xff]
        %v794 = vld [vmem:[%s607 + $0x18] sm:$0xff]
        %v795 = vpack.c.bf16 %v792, %v791
        %v796 = vpack.c.bf16 %v794, %v793
        %v797 = vld [vmem:[%s715] sm:$0x1]
        %v799 = vlaneseq
        %v800 = vshrl.u32 %v799, 7
        %v801 = vsub.s32 0, %v800
        %v802 = vrot.slane %v797, %v801
        %v805 = vsel %vm747, %v731, 0
        %807 = vmatprep.subr.bf16.mxu0 0
        %808 = vmatpush1.bf16.msra.mxu0 0
        %809 = vmatprep.subr.bf16.mxu0 0
        %810 = vmatpush1.bf16.msra.mxu0 0
        %811 = vmatprep.subr.bf16.mxu0 0
        %812 = vmatpush1.bf16.msra.mxu0 0
        %813 = vmatprep.subr.bf16.mxu0 0
        %814 = vmatpush1.bf16.msra.mxu0 0
        %815 = vmatprep.subr.bf16.mxu0 0
        %816 = vmatpush1.bf16.msra.mxu0 0
        %817 = vmatprep.subr.bf16.mxu0 0
        %818 = vmatpush1.bf16.msra.mxu0 0
        %819 = vmatprep.subr.bf16.mxu0 0
        %820 = vmatpush1.bf16.msra.mxu0 %v796
        %821 = vmatprep.subr.bf16.mxu0 0
        %822 = vmatpush1.bf16.msra.mxu0 %v795
        %823 = vmatprep.subr.bf16.mxu0 0
        %824 = vmatpush2.bf16.msra.mxu0 0
        %825 = vmatprep.subr.bf16.mxu0 0
        %826 = vmatpush2.bf16.msra.mxu0 0
        %827 = vmatprep.subr.bf16.mxu0 0
        %828 = vmatpush2.bf16.msra.mxu0 0
        %829 = vmatprep.subr.bf16.mxu0 0
        %830 = vmatpush2.bf16.msra.mxu0 0
        %831 = vmatprep.subr.bf16.mxu0 0
        %832 = vmatpush2.bf16.msra.mxu0 0
        %833 = vmatprep.subr.bf16.mxu0 0
        %834 = vmatpush2.bf16.msra.mxu0 0
        %835 = vmatprep.subr.bf16.mxu0 0
        %836 = vmatpush2.bf16.msra.mxu0 0
        %837 = vmatprep.subr.bf16.mxu0 0
        %838 = vmatpush2.bf16.msra.mxu0 0
        %839 = vmatprep.mubr.bf16.mxu0 0
        %840 = vmatmul.mubr.bf16.gmra.mxu0 %v805
        %v841 = vpop.f32.mrf.mxu0
        %v842 = vadd.f32 %v802, %v841
        %v843 = vpop.f32.mrf.mxu0
        %v844 = vpop.f32.mrf.mxu0
        %v845 = vpop.f32.mrf.mxu0
        %846 = vdwg.mxu0
        %v847 = vld [vmem:[%s616] sm:$0xff]
        %v848 = vld [vmem:[%s616 + $0x8] sm:$0xff]
        %v849 = vld [vmem:[%s616 + $0x10] sm:$0xff]
        %v850 = vld [vmem:[%s616 + $0x18] sm:$0xff]
        %v851 = vpack.c.bf16 %v848, %v847
        %v852 = vpack.c.bf16 %v850, %v849
        %v853 = vld [vmem:[%s718] sm:$0x1]
        %v855 = vlaneseq
        %v856 = vshrl.u32 %v855, 7
        %v857 = vsub.s32 0, %v856
        %v858 = vrot.slane %v853, %v857
        %v861 = vsel %vm747, %v733, 0
        %863 = vmatprep.subr.bf16.mxu0 0
        %864 = vmatpush1.bf16.msra.mxu0 0
        %865 = vmatprep.subr.bf16.mxu0 0
        %866 = vmatpush1.bf16.msra.mxu0 0
        %867 = vmatprep.subr.bf16.mxu0 0
        %868 = vmatpush1.bf16.msra.mxu0 0
        %869 = vmatprep.subr.bf16.mxu0 0
        %870 = vmatpush1.bf16.msra.mxu0 0
        %871 = vmatprep.subr.bf16.mxu0 0
        %872 = vmatpush1.bf16.msra.mxu0 0
        %873 = vmatprep.subr.bf16.mxu0 0
        %874 = vmatpush1.bf16.msra.mxu0 0
        %875 = vmatprep.subr.bf16.mxu0 0
        %876 = vmatpush1.bf16.msra.mxu0 %v852
        %877 = vmatprep.subr.bf16.mxu0 0
        %878 = vmatpush1.bf16.msra.mxu0 %v851
        %879 = vmatprep.subr.bf16.mxu0 0
        %880 = vmatpush2.bf16.msra.mxu0 0
        %881 = vmatprep.subr.bf16.mxu0 0
        %882 = vmatpush2.bf16.msra.mxu0 0
        %883 = vmatprep.subr.bf16.mxu0 0
        %884 = vmatpush2.bf16.msra.mxu0 0
        %885 = vmatprep.subr.bf16.mxu0 0
        %886 = vmatpush2.bf16.msra.mxu0 0
        %887 = vmatprep.subr.bf16.mxu0 0
        %888 = vmatpush2.bf16.msra.mxu0 0
        %889 = vmatprep.subr.bf16.mxu0 0
        %890 = vmatpush2.bf16.msra.mxu0 0
        %891 = vmatprep.subr.bf16.mxu0 0
        %892 = vmatpush2.bf16.msra.mxu0 0
        %893 = vmatprep.subr.bf16.mxu0 0
        %894 = vmatpush2.bf16.msra.mxu0 0
        %895 = vmatprep.mubr.bf16.mxu0 0
        %896 = vmatmul.mubr.bf16.gmra.mxu0 %v861
        %v897 = vpop.f32.mrf.mxu0
        %v898 = vadd.f32 %v858, %v897
        %v899 = vpop.f32.mrf.mxu0
        %v900 = vpop.f32.mrf.mxu0
        %v901 = vpop.f32.mrf.mxu0
        %902 = vdwg.mxu0
        %v903 = vpack.c.bf16 %v786, %v786
        %v904 = vpack.c.bf16 %v842, %v842
        %v906 = vsel %vm747, %v903, 0
        %v909 = vsel %vm747, %v904, 0
        %911 = vmatprep.subr.bf16.mxu0 0
        %912 = vmatpush1.bf16.xpose.msra.mxu0 0
        %913 = vmatprep.subr.bf16.mxu0 0
        %914 = vmatpush1.bf16.xpose.msra.mxu0 0
        %915 = vmatprep.subr.bf16.mxu0 0
        %916 = vmatpush1.bf16.xpose.msra.mxu0 0
        %917 = vmatprep.subr.bf16.mxu0 0
        %918 = vmatpush1.bf16.xpose.msra.mxu0 0
        %919 = vmatprep.subr.bf16.mxu0 0
        %920 = vmatpush1.bf16.xpose.msra.mxu0 0
        %921 = vmatprep.subr.bf16.mxu0 0
        %922 = vmatpush1.bf16.xpose.msra.mxu0 0
        %923 = vmatprep.subr.bf16.mxu0 0
        %924 = vmatpush1.bf16.xpose.msra.mxu0 0
        %925 = vmatprep.subr.bf16.mxu0 0
        %926 = vmatpush1.bf16.xpose.msra.mxu0 %v909
        %927 = vmatprep.subr.bf16.mxu0 0
        %928 = vmatpush2.bf16.xpose.msra.mxu0 0
        %929 = vmatprep.subr.bf16.mxu0 0
        %930 = vmatpush2.bf16.xpose.msra.mxu0 0
        %931 = vmatprep.subr.bf16.mxu0 0
        %932 = vmatpush2.bf16.xpose.msra.mxu0 0
        %933 = vmatprep.subr.bf16.mxu0 0
        %934 = vmatpush2.bf16.xpose.msra.mxu0 0
        %935 = vmatprep.subr.bf16.mxu0 0
        %936 = vmatpush2.bf16.xpose.msra.mxu0 0
        %937 = vmatprep.subr.bf16.mxu0 0
        %938 = vmatpush2.bf16.xpose.msra.mxu0 0
        %939 = vmatprep.subr.bf16.mxu0 0
        %940 = vmatpush2.bf16.xpose.msra.mxu0 0
        %941 = vmatprep.subr.bf16.mxu0 0
        %942 = vmatpush2.bf16.xpose.msra.mxu0 0
        %943 = vmatprep.mubr.bf16.mxu0 0
        %944 = vmatmul.mubr.bf16.gmra.mxu0 %v906
        %v945 = vpop.f32.mrf.mxu0
        %v946 = vadd.f32 0.0, %v945
        %v947 = vpop.f32.mrf.mxu0
        %v948 = vpop.f32.mrf.mxu0
        %v949 = vpop.f32.mrf.mxu0
        %950 = vdwg.mxu0
        %v951 = vmul.f32 %v946, 0.17677669
        %vm952 = vcmask 64512
        %v953 = vsel %vm952, %v951, -inf
        %954 = vmax.xlane.f32.xlu0 %v953
        %v955 = vpop.xlane.xlu0 %954
        %v956 = vsub.f32 %v951, %v955
        %v957 = vmul.f32 %v956, 1.442695
        %v958 = vpow.pop %v957
        %v959 = vsel %vm952, %v958, 0.0
        %960 = vadd.xlane.f32.xlu0 %v959
        %v961 = vpop.xlane.xlu0 %960
        %v962 = vrcp.pop %v961
        %v963 = vmul.f32 %v961, %v962
        %v964 = vsub.f32 2.0, %v963
        %v965 = vmul.f32 %v962, %v964
        %v966 = vmul.f32 %v958, %v965
        %v967 = vpack.c.bf16 %v966, %v966
        %v968 = vpack.c.bf16 %v898, %v898
        %v970 = vsel %vm952, %v967, 0
        %vm972 = vcmask 1043456
        %v974 = vsel %vm972, %v968, 0
        %976 = vmatprep.subr.bf16.mxu0 0
        %977 = vmatpush1.bf16.msra.mxu0 0
        %978 = vmatprep.subr.bf16.mxu0 0
        %979 = vmatpush1.bf16.msra.mxu0 0
        %980 = vmatprep.subr.bf16.mxu0 0
        %981 = vmatpush1.bf16.msra.mxu0 0
        %982 = vmatprep.subr.bf16.mxu0 0
        %983 = vmatpush1.bf16.msra.mxu0 0
        %984 = vmatprep.subr.bf16.mxu0 0
        %985 = vmatpush1.bf16.msra.mxu0 0
        %986 = vmatprep.subr.bf16.mxu0 0
        %987 = vmatpush1.bf16.msra.mxu0 0
        %988 = vmatprep.subr.bf16.mxu0 0
        %989 = vmatpush1.bf16.msra.mxu0 0
        %990 = vmatprep.subr.bf16.mxu0 0
        %991 = vmatpush1.bf16.msra.mxu0 %v974
        %992 = vmatprep.subr.bf16.mxu0 0
        %993 = vmatpush2.bf16.msra.mxu0 0
        %994 = vmatprep.subr.bf16.mxu0 0
        %995 = vmatpush2.bf16.msra.mxu0 0
        %996 = vmatprep.subr.bf16.mxu0 0
        %997 = vmatpush2.bf16.msra.mxu0 0
        %998 = vmatprep.subr.bf16.mxu0 0
        %999 = vmatpush2.bf16.msra.mxu0 0
        %1000 = vmatprep.subr.bf16.mxu0 0
        %1001 = vmatpush2.bf16.msra.mxu0 0
        %1002 = vmatprep.subr.bf16.mxu0 0
        %1003 = vmatpush2.bf16.msra.mxu0 0
        %1004 = vmatprep.subr.bf16.mxu0 0
        %1005 = vmatpush2.bf16.msra.mxu0 0
        %1006 = vmatprep.subr.bf16.mxu0 0
        %1007 = vmatpush2.bf16.msra.mxu0 0
        %1008 = vmatprep.mubr.bf16.mxu0 0
        %1009 = vmatmul.mubr.bf16.gmra.mxu0 %v970
        %v1010 = vpop.f32.mrf.mxu0
        %v1011 = vadd.f32 0.0, %v1010
        %v1012 = vpop.f32.mrf.mxu0
        %v1013 = vpop.f32.mrf.mxu0
        %v1014 = vpop.f32.mrf.mxu0
        %1015 = vdwg.mxu0
        %v1016 = vpack.c.bf16 %v1011, %v1011
        %v1017 = vld [vmem:[%s625] sm:$0xff]
        %v1018 = vld [vmem:[%s625 + $0x8] sm:$0xff]
        %v1019 = vld [vmem:[%s625 + $0x10] sm:$0xff]
        %v1020 = vld [vmem:[%s625 + $0x18] sm:$0xff]
        %v1021 = vpack.c.bf16 %v1018, %v1017
        %v1022 = vpack.c.bf16 %v1020, %v1019
        %v1024 = vsel %vm747, %v1016, 0
        %1026 = vmatprep.subr.bf16.mxu0 0
        %1027 = vmatpush1.bf16.msra.mxu0 0
        %1028 = vmatprep.subr.bf16.mxu0 0
        %1029 = vmatpush1.bf16.msra.mxu0 0
        %1030 = vmatprep.subr.bf16.mxu0 0
        %1031 = vmatpush1.bf16.msra.mxu0 0
        %1032 = vmatprep.subr.bf16.mxu0 0
        %1033 = vmatpush1.bf16.msra.mxu0 0
        %1034 = vmatprep.subr.bf16.mxu0 0
        %1035 = vmatpush1.bf16.msra.mxu0 0
        %1036 = vmatprep.subr.bf16.mxu0 0
        %1037 = vmatpush1.bf16.msra.mxu0 0
        %1038 = vmatprep.subr.bf16.mxu0 0
        %1039 = vmatpush1.bf16.msra.mxu0 %v1022
        %1040 = vmatprep.subr.bf16.mxu0 0
        %1041 = vmatpush1.bf16.msra.mxu0 %v1021
        %1042 = vmatprep.subr.bf16.mxu0 0
        %1043 = vmatpush2.bf16.msra.mxu0 0
        %1044 = vmatprep.subr.bf16.mxu0 0
        %1045 = vmatpush2.bf16.msra.mxu0 0
        %1046 = vmatprep.subr.bf16.mxu0 0
        %1047 = vmatpush2.bf16.msra.mxu0 0
        %1048 = vmatprep.subr.bf16.mxu0 0
        %1049 = vmatpush2.bf16.msra.mxu0 0
        %1050 = vmatprep.subr.bf16.mxu0 0
        %1051 = vmatpush2.bf16.msra.mxu0 0
        %1052 = vmatprep.subr.bf16.mxu0 0
        %1053 = vmatpush2.bf16.msra.mxu0 0
        %1054 = vmatprep.subr.bf16.mxu0 0
        %1055 = vmatpush2.bf16.msra.mxu0 0
        %1056 = vmatprep.subr.bf16.mxu0 0
        %1057 = vmatpush2.bf16.msra.mxu0 0
        %1058 = vmatprep.mubr.bf16.mxu0 0
        %1059 = vmatmul.mubr.bf16.gmra.mxu0 %v1024
        %v1060 = vpop.f32.mrf.mxu0
        %v1061 = vadd.f32 0.0, %v1060
        %v1062 = vpop.f32.mrf.mxu0
        %v1063 = vpop.f32.mrf.mxu0
        %v1064 = vpop.f32.mrf.mxu0
        %1065 = vdwg.mxu0
        %v1066 = vld [vmem:[#allocation2] sm:$0xff]
        %v1067 = vadd.f32 %v1066, %v1061
        %1068 = vst.msk [vmem:[#allocation2] sm:$0xff] %vm747, %v1067
        %v1069 = vld [vmem:[%s709] sm:$0xff]
        %v1070 = vmul.f32 %v966, 0.25
        %v1071 = vadd.f32 %v1069, %v1070
        %1072 = vst.msk [vmem:[%s709] sm:$0xff] %vm952, %v1071
        %p1073 = scmp.eq.s32.totalorder %s47, 3
        // Predicated region
        $region97: #{tpu_custom_call.1} parent=63 // pred_check
          %p1074 = pneg %p1073
        $region98: #{tpu_custom_call.1} parent=63 // pred_check_branch
          %1076 = sbr.rel (%p1074) target = $region100
        $region99: #{tpu_custom_call.1} parent=63 // pred_region
          %v1077 = vld [vmem:[#allocation2] sm:$0xff]
          %v1078 = vld [vmem:[%s10] sm:$0x1]
          %v1080 = vlaneseq
          %v1081 = vshrl.u32 %v1080, 7
          %v1082 = vsub.s32 0, %v1081
          %v1083 = vrot.slane %v1078, %v1082
          %v1085 = vadd.f32 %v1077, %v1083
          %1086 = vst.msk [vmem:[%s702] sm:$0xff] %vm747, %v1085
        $region100: #{tpu_custom_call.1} parent=63 // pred_fallthru
          _
        %s1087 = sand.u32 %s343, 1
        %s1088 = scalar_lea.sflag [#allocation5], %s1087
        %s1089 = sand.u32 %s343, 1
        %s1090 = smul.addr %s1089, 8
        %s1091 = scalar_lea.vmem [#allocation15], %s1090
        %s1092 = sand.u32 %s369, 1
        %s1093 = scalar_lea.sflag [#allocation17], %s1092
        %s1094 = sand.u32 %s369, 1
        %s1095 = smul.addr %s1094, 8
        %s1096 = scalar_lea.vmem [#allocation16], %s1095
        // Predicated region
        $region101: #{tpu_custom_call.1} parent=63 // pred_check
          %p1097 = pneg %p353
        $region102: #{tpu_custom_call.1} parent=63 // pred_check_branch
          %1099 = sbr.rel (%p1097) target = $region104
        $region103: #{tpu_custom_call.1} parent=63 // pred_region
          %s1101 = ssub.s32 128, 128
          %1102 = vsyncadd %s1088, %s1101
          %s1103 = smul.addr %s46, 128
          %s1104 = scalar_lea.hbm %s11, %s1103
          %s1106 = sshll.u32 %s1091, 4
          %s1107 = int_to_ptr.vmem [resolvable:$true] %s1106
          %1109 = dma.vmem_to_hbm [thread:$0]  %s1107, 128, %s1104, %s1088
        $region104: #{tpu_custom_call.1} parent=63 // pred_fallthru
          _
        // Predicated region
        $region105: #{tpu_custom_call.1} parent=63 // pred_check
          %p1110 = pneg %p379
        $region106: #{tpu_custom_call.1} parent=63 // pred_check_branch
          %1112 = sbr.rel (%p1110) target = $region108
        $region107: #{tpu_custom_call.1} parent=63 // pred_region
          %s1114 = ssub.s32 128, 128
          %1115 = vsyncadd %s1093, %s1114
          %s1116 = smul.addr %s46, 128
          %s1117 = scalar_lea.hbm %s12, %s1116
          %s1119 = sshll.u32 %s1096, 4
          %s1120 = int_to_ptr.vmem [resolvable:$true] %s1119
          %1122 = dma.vmem_to_hbm [thread:$0]  %s1120, 128, %s1117, %s1093
        $region108: #{tpu_custom_call.1} parent=63 // pred_fallthru
          _
      $region64: #{tpu_custom_call.1} parent=5 // pred_fallthru
        _
      %p1123 = scmp.le.s32.totalorder 2, %s37
      // Predicated region
      $region109: #{tpu_custom_call.1} parent=5 // pred_check
        %p1124 = pneg %p1123
      $region110: #{tpu_custom_call.1} parent=5 // pred_check_branch
        %1126 = sbr.rel (%p1124) target = $region112
      $region111: #{tpu_custom_call.1} parent=5 // pred_region
        %s1127 = ssub.s32 %s37, 2
        // Predicated region
        $region113: #{tpu_custom_call.1} parent=111 // pred_check
          %p1128 = pneg %p359
        $region114: #{tpu_custom_call.1} parent=111 // pred_check_branch
          %1130 = sbr.rel (%p1128) target = $region116
        $region115: #{tpu_custom_call.1} parent=111 // pred_region
          %s1131 = sand.u32 %s344, 1
          %s1132 = scalar_lea.sflag [#allocation5], %s1131
          %s1133 = sand.u32 %s344, 1
          %s1134 = smul.addr %s1133, 8
          %s1135 = scalar_lea.vmem [#allocation15], %s1134
          %1136 = dma.done %s1132, 128
        $region116: #{tpu_custom_call.1} parent=111 // pred_fallthru
          _
        // Predicated region
        $region117: #{tpu_custom_call.1} parent=111 // pred_check
          %p1137 = pneg %p385
        $region118: #{tpu_custom_call.1} parent=111 // pred_check_branch
          %1139 = sbr.rel (%p1137) target = $region120
        $region119: #{tpu_custom_call.1} parent=111 // pred_region
          %s1140 = sand.u32 %s370, 1
          %s1141 = scalar_lea.sflag [#allocation17], %s1140
          %s1142 = sand.u32 %s370, 1
          %s1143 = smul.addr %s1142, 8
          %s1144 = scalar_lea.vmem [#allocation16], %s1143
          %1145 = dma.done %s1141, 128
        $region120: #{tpu_custom_call.1} parent=111 // pred_fallthru
          _
      $region112: #{tpu_custom_call.1} parent=5 // pred_fallthru
        _
    $region6: #{tpu_custom_call.1} parent=1 // loop_footer
      %s41 = sadd.s32 1, %s37
    $region7: #{tpu_custom_call.1} parent=1 // loop_footer_branch
      %36 = sbr.rel target = $region3
    $region8: #{tpu_custom_call.1} parent=1 // loop_exit
      _
    %1146 = vsyncpa [#allocation4], 1
    %s1147 = scalar_lea.sflag [#allocation4], 1
    %1148 = vsyncpa %s1147, 1
    %1149 = vsyncpa [#allocation7], 1
    %s1150 = scalar_lea.sflag [#allocation7], 1
    %1151 = vsyncpa %s1150, 1
    %1152 = vsyncpa [#allocation10], 1
    %s1153 = scalar_lea.sflag [#allocation10], 1
    %1154 = vsyncpa %s1153, 1
    %1155 = vsyncpa [#allocation13], 1
    %s1156 = scalar_lea.sflag [#allocation13], 1
    %1157 = vsyncpa %s1156, 1
    %1158 = vsyncpa [#allocation5], 1
    %s1159 = scalar_lea.sflag [#allocation5], 1
    %1160 = vsyncpa %s1159, 1
    %1161 = vsyncpa [#allocation17], 1
    %s1162 = scalar_lea.sflag [#allocation17], 1
    %1163 = vsyncpa %s1162, 1

</llo_original>
